<compile_context>
chip_gen: v7x
topology: tpu7x:2x2x1
jax: 0.10.0
libtpu: 0.0.40
codegen_flags: <defaults>
</compile_context>

<pallas_src>
import functools

import numpy as np

import jax
import jax.numpy as jnp
from jax import lax
from jax.experimental import pallas as pl
from jax.experimental.pallas import tpu as pltpu


# ---------------------------------------------------------------------------
# Kernel 1: fused input projection + LSTM recurrence.
# Grid = (batch blocks ["parallel"], time blocks ["arbitrary"]).
# Per grid step: one (k_time*tb_batch, E) @ (E, 4H) projection matmul (off the serial
# chain), then K unrolled timesteps where only h @ Whh^T is serial.
# h/c scratch is per-batch-block, re-initialized at t==0 of every batch block, so the
# "parallel" batch axis stays safe for megacore sharding.
# ---------------------------------------------------------------------------
def lstm_fused_kernel(x_ref, wih_ref, whh_ref, b_ref, h_out_ref, h_sc, c_sc,
                      *, k_time, tb_batch, hidden):
    H = hidden

    @pl.when(pl.program_id(1) == 0)
    def _():
        h_sc[...] = jnp.zeros_like(h_sc)
        c_sc[...] = jnp.zeros_like(c_sc)

    # Resident weights (constant index_map).
    # TODO(synk): single-buffer these via pipeline_mode=pl.Buffered(1) at production H
    # (Whh bf16 is 8 MiB at H=1024) to fit v7x's 64 MiB VMEM; toy sizes don't need it.
    wih = wih_ref[...]                      # (E, 4H)  bf16
    whh = whh_ref[...]                      # (H, 4H)  bf16
    bias = b_ref[...]                       # (1, 4H)  f32

    # Fused, hoisted input projection for the whole time block: one big MXU matmul,
    # independent of the h-chain so the scheduler can overlap it with the recurrence.
    xg_all = (jnp.dot(x_ref[...], wih, preferred_element_type=jnp.float32)
              + bias)                       # (k_time*tb_batch, 4H) f32, stays on-chip

    # Fully unrolled inner loop over the K timesteps of this block (static slices /
    # stores; amortizes per-grid-step overhead).
    # TODO(synk): for v5e, stage Whh across the K steps with
    # pltpu.matmul_push_rhs / matmul_acc_lhs / matmul_pop to avoid re-pushing the RHS.
    for k in range(k_time):
        gates = (xg_all[k * tb_batch:(k + 1) * tb_batch]
                 + jnp.dot(h_sc[...].astype(whh.dtype), whh,
                           preferred_element_type=jnp.float32))      # (tb, 4H) f32
        # Gate columns pre-permuted to [i, f, o, g]: one wide sigmoid + one tanh.
        # TODO(synk): keep H a multiple of 128 at production sizes so these slices
        # fall on lane boundaries (H=32 here is a toy size).
        sig = jax.nn.sigmoid(gates[:, :3 * H])
        i_g = sig[:, 0 * H:1 * H]
        f_g = sig[:, 1 * H:2 * H]
        o_g = sig[:, 2 * H:3 * H]
        g_g = jnp.tanh(gates[:, 3 * H:4 * H])
        c = f_g * c_sc[...] + i_g * g_g
        h = o_g * jnp.tanh(c)
        c_sc[...] = c
        h_sc[...] = h
        # TODO(synk): emit bf16 h here to halve the writeback HBM traffic once the
        # strided packed (tb, k, H) bf16 store path is validated at production H.
        h_out_ref[:, k, :] = h              # batch-major (tb, K, H) writeback slab


def run_lstm_fused(x4d, w_ih_t_bf16, w_hh_t_bf16, bias_row, *, k_time, tb_batch, hidden):
    n_bblk, n_tblk, rows, E = x4d.shape
    G = w_ih_t_bf16.shape[1]
    H = hidden
    B = n_bblk * tb_batch
    T_pad = n_tblk * k_time
    assert rows == k_time * tb_batch

    # Explicit VMEM budget (double-buffered blocks + resident weights + scratch), with
    # headroom; re-derive against 64 MiB physical VMEM on v7x at production sizes.
    est = (2 * rows * E * 2                    # x block, double-buffered, bf16
           + 2 * E * G * 2                     # Wih (double-buffered today)
           + 2 * H * G * 2                     # Whh (double-buffered today)
           + 2 * G * 4                         # bias row
           + 2 * tb_batch * k_time * H * 4     # h_out block, double-buffered, f32
           + 2 * tb_batch * H * 4)             # h/c scratch
    vmem_limit = int(min(max(4 * est, 8 << 20), 32 << 20))

    return pl.pallas_call(
        functools.partial(lstm_fused_kernel,
                          k_time=k_time, tb_batch=tb_batch, hidden=H),
        out_shape=jax.ShapeDtypeStruct((B, T_pad, H), jnp.float32),
        grid_spec=pltpu.PrefetchScalarGridSpec(
            num_scalar_prefetch=0,
            grid=(n_bblk, n_tblk),
            in_specs=[
                pl.BlockSpec((None, None, rows, E), lambda b, t: (b, t, 0, 0)),
                pl.BlockSpec((E, G), lambda b, t: (0, 0)),
                pl.BlockSpec((H, G), lambda b, t: (0, 0)),
                pl.BlockSpec((1, G), lambda b, t: (0, 0)),
            ],
            out_specs=pl.BlockSpec((tb_batch, k_time, H), lambda b, t: (b, t, 0)),
            scratch_shapes=[pltpu.VMEM((tb_batch, H), jnp.float32),
                            pltpu.VMEM((tb_batch, H), jnp.float32)],
        ),
        compiler_params=pltpu.CompilerParams(
            dimension_semantics=("parallel", "arbitrary"),
            vmem_limit_bytes=vmem_limit),
    )(x4d, w_ih_t_bf16, w_hh_t_bf16, bias_row)


# ---------------------------------------------------------------------------
# Kernel 2: hidden rows -> logits, temperature, log_softmax, target gather.
# Grid over row blocks of the flattened (B*T_pad, H) hidden slab ("parallel"); each
# step runs one large matmul over Rb rows.  Per-token target log-probs are the output;
# the per-sequence time sum (and pad-row drop) happens in the wrapper.
# ---------------------------------------------------------------------------
def logprob_kernel(h_ref, w_ref, b_ref, tgt_ref, out_ref, *, temperature):
    h = h_ref[...]                                   # (Rb, H) f32
    logits = (jnp.dot(h.astype(w_ref.dtype), w_ref[...],
                      preferred_element_type=jnp.float32)
              + b_ref[...])                          # (Rb, V) f32
    logits = logits * temperature                    # matches module: log_softmax(logit * T)
    m = jnp.max(logits, axis=-1, keepdims=True)
    sh = logits - m
    lse = jnp.log(jnp.sum(jnp.exp(sh), axis=-1, keepdims=True))
    logp = sh - lse                                  # (Rb, V)

    # Target gather via one-hot select + lane reduce over V (no segment-sum matmul).
    col = lax.broadcasted_iota(jnp.int32, logp.shape, 1)
    sel = jnp.where(col == tgt_ref[...], logp, 0.0)
    out_ref[...] = jnp.sum(sel, axis=-1, keepdims=True)   # (Rb, 1)


def run_logprob(h2d, w_out_t_bf16, b_out_row, tgt2d, temperature):
    N, H = h2d.shape
    V = w_out_t_bf16.shape[1]
    # Row block: as large as reasonable so the matmul has >=128/256 rows at real sizes.
    if N <= 512:
        rb = N
    else:
        rb = next((d for d in (512, 256, 128, 64, 32, 16, 8) if N % d == 0), N)
    # TODO(synk): for large vocab (V~32k), tile V with an online max/LSE accumulated in
    # VMEM scratch (V-tile grid axis "arbitrary") and single-buffer the W_out tile so
    # the resident weight + logits tile fit v7x's 64 MiB VMEM.
    return pl.pallas_call(
        functools.partial(logprob_kernel, temperature=float(temperature)),
        out_shape=jax.ShapeDtypeStruct((N, 1), jnp.float32),
        grid_spec=pltpu.PrefetchScalarGridSpec(
            num_scalar_prefetch=0,
            grid=(N // rb,),
            in_specs=[
                pl.BlockSpec((rb, H), lambda i: (i, 0)),
                pl.BlockSpec((H, V), lambda i: (0, 0)),
                pl.BlockSpec((1, V), lambda i: (0, 0)),
                pl.BlockSpec((rb, 1), lambda i: (i, 0)),
            ],
            out_specs=pl.BlockSpec((rb, 1), lambda i: (i, 0)),
        ),
        compiler_params=pltpu.CompilerParams(
            dimension_semantics=("parallel",),
            vmem_limit_bytes=32 << 20),
    )(h2d, w_out_t_bf16, b_out_row, tgt2d)


# ---------------------------------------------------------------------------
# Model wrapper (glue in plain JAX: embedding gather, padding, contiguous reshapes).
# ---------------------------------------------------------------------------
class LSTMPallas:
    def __init__(self, embedding_dim, hidden_dim, vocab_size, tagset_size, key):
        assert tagset_size == vocab_size, "module's .view implies tagset_size == vocab_size"
        self.E, self.H, self.V = embedding_dim, hidden_dim, vocab_size
        H = hidden_dim
        ks = jax.random.split(key, 7)
        s = 0.1
        self.emb = jax.random.normal(ks[0], (vocab_size, embedding_dim), jnp.float32) * s
        self.w_ih = jax.random.normal(ks[1], (4 * H, embedding_dim), jnp.float32) * s
        self.w_hh = jax.random.normal(ks[2], (4 * H, H), jnp.float32) * s
        self.b_ih = jax.random.normal(ks[3], (4 * H,), jnp.float32) * s
        self.b_hh = jax.random.normal(ks[4], (4 * H,), jnp.float32) * s
        self.w_out = jax.random.normal(ks[5], (tagset_size, H), jnp.float32) * s
        self.b_out = jax.random.normal(ks[6], (tagset_size,), jnp.float32) * s

        # Kernel-side weight prep: gate columns permuted [i, f, g, o] -> [i, f, o, g]
        # so the recurrence does one wide sigmoid + one tanh per step; bf16 for the MXU.
        perm = np.concatenate([np.arange(0, H), np.arange(H, 2 * H),
                               np.arange(3 * H, 4 * H), np.arange(2 * H, 3 * H)])
        self.w_ih_t_bf16 = self.w_ih.T[:, perm].astype(jnp.bfloat16)      # (E, 4H)
        self.w_hh_t_bf16 = self.w_hh.T[:, perm].astype(jnp.bfloat16)      # (H, 4H)
        self.bias_row = (self.b_ih + self.b_hh)[perm][None, :]            # (1, 4H) f32
        self.w_out_t_bf16 = self.w_out.T.astype(jnp.bfloat16)             # (H, V)
        self.b_out_row = self.b_out[None, :]                              # (1, V)  f32

    def forward(self, sentences, temperature=1.0):
        # condition-is-None path of the PyTorch forward.
        inputs = sentences[:, :-1]                       # (bs, T)
        target = sentences[:, 1:]                        # (bs, T)
        bs, T = inputs.shape
        K = 8                                            # timesteps per recurrence grid step
        T_pad = ((T + K - 1) // K) * K

        # One batch block on v5e/v6e (1 TensorCore).
        # TODO(synk): on v7x set tb_batch = bs // 2 (padding batch to a multiple of 16)
        # so the "parallel" batch grid axis shards the recurrence over both TensorCores.
        tb_batch = bs

        # Embedding gather, time-major, padded to T_pad.
        # TODO(synk): fuse this gather into the recurrence kernel via scalar-prefetched
        # token ids (pl.Element row indexing on emb) to drop the (T_pad,B,E) HBM trip.
        tok_t = inputs.T.astype(jnp.int32)                               # (T, bs)
        x_tbe = jnp.take(self.emb, tok_t, axis=0).astype(jnp.bfloat16)   # (T, bs, E)
        x_tbe = jnp.pad(x_tbe, ((0, T_pad - T), (0, 0), (0, 0)))
        # Layout for the fused kernel: (batch blocks, time blocks, K*tb_batch, E).
        # Contiguous reshapes only (no data movement) since tb_batch == bs.
        x4d = x_tbe.reshape(T_pad // K, K * bs, self.E)[None]

        # Fused projection + recurrence: batch-major (bs, T_pad, H) f32 hidden states.
        h_bth = run_lstm_fused(x4d, self.w_ih_t_bf16, self.w_hh_t_bf16, self.bias_row,
                               k_time=K, tb_batch=tb_batch, hidden=self.H)

        # Output projection + log_softmax + target gather over ALL bs*T_pad rows.
        tgt2d = jnp.pad(target, ((0, 0), (0, T_pad - T))).astype(jnp.int32)
        tgt2d = tgt2d.reshape(bs * T_pad, 1)
        tok = run_logprob(h_bth.reshape(bs * T_pad, self.H), self.w_out_t_bf16,
                          self.b_out_row, tgt2d, temperature)            # (bs*T_pad, 1)

        # NLLLoss(reduction='none') * -1 summed over the T real timesteps per sequence
        # (pad rows simply dropped by the static slice).
        return tok.reshape(bs, T_pad)[:, :T].sum(axis=1)                  # (bs,)

    # Pure-JAX f32 reference for verification (matches the PyTorch math, original gate order).
    def forward_ref(self, sentences, temperature=1.0):
        inputs = sentences[:, :-1]
        target = sentences[:, 1:]
        bs, T = inputs.shape
        x = jnp.take(self.emb, inputs, axis=0)           # (bs, T, E)

        def step(carry, xt):
            h, c = carry
            gates = xt @ self.w_ih.T + self.b_ih + h @ self.w_hh.T + self.b_hh
            i, f, g, o = jnp.split(gates, 4, axis=-1)
            i, f, o = jax.nn.sigmoid(i), jax.nn.sigmoid(f), jax.nn.sigmoid(o)
            g = jnp.tanh(g)
            c = f * c + i * g
            h = o * jnp.tanh(c)
            return (h, c), h

        h0 = jnp.zeros((bs, self.H), jnp.float32)
        c0 = jnp.zeros((bs, self.H), jnp.float32)
        _, hs = lax.scan(step, (h0, c0), jnp.transpose(x, (1, 0, 2)))
        hs = jnp.transpose(hs, (1, 0, 2))                # (bs, T, H)
        logits = hs @ self.w_out.T + self.b_out
        logp = jax.nn.log_softmax(logits * temperature, axis=-1)
        tok = jnp.take_along_axis(logp, target[..., None], axis=-1)[..., 0]
        return tok.sum(axis=1)


# TODO(synk): sampling paths (sample / conditional_sample) use torch.multinomial in an
# autoregressive Python loop; not part of forward(), not implemented here.

if __name__ == "__main__":
    embedding_dim, hidden_dim, vocab_size, tagset_size = 16, 32, 32, 32
    bs, sl = 2, 8

    key = jax.random.PRNGKey(0)
    k_model, k_data = jax.random.split(key)
    model = LSTMPallas(embedding_dim, hidden_dim, vocab_size, tagset_size, k_model)
    sentences = jax.random.randint(k_data, (bs, sl), 0, vocab_size, dtype=jnp.int32)

    out = jax.block_until_ready(model.forward(sentences, temperature=1.0))
    ref = jax.block_until_ready(model.forward_ref(sentences, temperature=1.0))

    assert out.shape == (bs,)
    # bf16 MXU operands vs f32 reference -> modest tolerance.
    assert jnp.allclose(out, ref, atol=2e-2, rtol=2e-2), (out, ref)

    print("KERNEL_OK")
</pallas_src>

<mosaic_0001>
module attributes {stable_mosaic.version = 11 : i64} {
  func.func @lstm_fused_kernel(%arg0: i32, %arg1: i32, %arg2: memref<1x1x16x16xbf16, #tpu.memory_space<vmem>>, %arg3: memref<16x128xbf16, #tpu.memory_space<vmem>>, %arg4: memref<32x128xbf16, #tpu.memory_space<vmem>>, %arg5: memref<1x128xf32, #tpu.memory_space<vmem>>, %arg6: memref<2x8x32xf32, #tpu.memory_space<vmem>>, %arg7: memref<2x32xf32, #tpu.memory_space<vmem>>, %arg8: memref<2x32xf32, #tpu.memory_space<vmem>>) attributes {dimension_semantics = [#tpu.dimension_semantics<parallel>, #tpu.dimension_semantics<arbitrary>], iteration_bounds = array<i64: 1, 1>, scalar_prefetch = 0 : i64, scratch_operands = 2 : i64, tpu.core_type = #tpu.core_type<tc>, window_params = [{transform_indices = @transform_0, window_bounds = array<i64: 1, 1, 16, 16>}, {pipeline_mode = #tpu.pipeline_mode<synchronous>, transform_indices = @transform_1, window_bounds = array<i64: 16, 128>}, {pipeline_mode = #tpu.pipeline_mode<synchronous>, transform_indices = @transform_2, window_bounds = array<i64: 32, 128>}, {pipeline_mode = #tpu.pipeline_mode<synchronous>, transform_indices = @transform_3, window_bounds = array<i64: 1, 128>}, {transform_indices = @transform_4, window_bounds = array<i64: 2, 8, 32>}]} {
    %c0_i32 = arith.constant 0 : i32
    %0 = arith.cmpi eq, %arg1, %c0_i32 : i32
    %1 = arith.extui %0 : i1 to i32
    %c0_i32_0 = arith.constant 0 : i32
    %2 = arith.cmpi ne, %1, %c0_i32_0 : i32
    scf.if %2 {
      %cst_107 = arith.constant 0.000000e+00 : f32
      %227 = vector.broadcast %cst_107 : f32 to vector<2x32xf32>
      %c0_108 = arith.constant 0 : index
      %c0_109 = arith.constant 0 : index
      %228 = vector.load %arg7[%c0_108, %c0_109] : memref<2x32xf32, #tpu.memory_space<vmem>>, vector<2x32xf32>
      tpu.vector_store %arg7[%c0_108, %c0_109], %227 {strides = array<i32>} : memref<2x32xf32, #tpu.memory_space<vmem>>, vector<2x32xf32>,
      %cst_110 = arith.constant 0.000000e+00 : f32
      %229 = vector.broadcast %cst_110 : f32 to vector<2x32xf32>
      %c0_111 = arith.constant 0 : index
      %c0_112 = arith.constant 0 : index
      %230 = vector.load %arg8[%c0_111, %c0_112] : memref<2x32xf32, #tpu.memory_space<vmem>>, vector<2x32xf32>
      tpu.vector_store %arg8[%c0_111, %c0_112], %229 {strides = array<i32>} : memref<2x32xf32, #tpu.memory_space<vmem>>, vector<2x32xf32>,
    } else {
    }
    %c0 = arith.constant 0 : index
    %c0_1 = arith.constant 0 : index
    %3 = vector.load %arg3[%c0, %c0_1] : memref<16x128xbf16, #tpu.memory_space<vmem>>, vector<16x128xbf16>
    %c0_2 = arith.constant 0 : index
    %c0_3 = arith.constant 0 : index
    %4 = vector.load %arg4[%c0_2, %c0_3] : memref<32x128xbf16, #tpu.memory_space<vmem>>, vector<32x128xbf16>
    %c0_4 = arith.constant 0 : index
    %c0_5 = arith.constant 0 : index
    %5 = vector.load %arg5[%c0_4, %c0_5] : memref<1x128xf32, #tpu.memory_space<vmem>>, vector<1x128xf32>
    %c0_6 = arith.constant 0 : index
    %c0_7 = arith.constant 0 : index
    %c0_8 = arith.constant 0 : index
    %c0_9 = arith.constant 0 : index
    %6 = vector.load %arg2[%c0_6, %c0_7, %c0_8, %c0_9] : memref<1x1x16x16xbf16, #tpu.memory_space<vmem>>, vector<1x1x16x16xbf16>
    %7 = vector.shape_cast %6 : vector<1x1x16x16xbf16> to vector<16x16xbf16>
    %cst = arith.constant dense<0.000000e+00> : vector<16x128xf32>
    %8 = tpu.matmul %7, %3, %cst {dimension_numbers = #tpu.dot_dimension_numbers<[1], [0], [0], [1], [0, 0, 1, 1], [], []>} : vector<16x16xbf16>, vector<16x128xbf16>, vector<16x128xf32> -> vector<16x128xf32>
    %9 = vector.broadcast %5 : vector<1x128xf32> to vector<16x128xf32>
    %10 = arith.addf %8, %9 : vector<16x128xf32>
    %11 = vector.extract_strided_slice %10 {offsets = [0, 0], sizes = [2, 128], strides = [1, 1]} : vector<16x128xf32> to vector<2x128xf32>
    %c0_10 = arith.constant 0 : index
    %c0_11 = arith.constant 0 : index
    %12 = vector.load %arg7[%c0_10, %c0_11] : memref<2x32xf32, #tpu.memory_space<vmem>>, vector<2x32xf32>
    %13 = arith.truncf %12 : vector<2x32xf32> to vector<2x32xbf16>
    %cst_12 = arith.constant dense<0.000000e+00> : vector<2x128xf32>
    %14 = tpu.matmul %13, %4, %cst_12 {dimension_numbers = #tpu.dot_dimension_numbers<[1], [0], [0], [1], [0, 0, 1, 1], [], []>} : vector<2x32xbf16>, vector<32x128xbf16>, vector<2x128xf32> -> vector<2x128xf32>
    %15 = arith.addf %11, %14 : vector<2x128xf32>
    %16 = vector.extract_strided_slice %15 {offsets = [0, 0], sizes = [2, 96], strides = [1, 1]} : vector<2x128xf32> to vector<2x96xf32>
    %17 = arith.negf %16 : vector<2x96xf32>
    %18 = math.exp %17 : vector<2x96xf32>
    %cst_13 = arith.constant 1.000000e+00 : f32
    %19 = vector.broadcast %cst_13 : f32 to vector<2x96xf32>
    %20 = arith.addf %19, %18 : vector<2x96xf32>
    %21 = arith.divf %19, %20 : vector<2x96xf32>
    %22 = vector.extract_strided_slice %21 {offsets = [0, 0], sizes = [2, 32], strides = [1, 1]} : vector<2x96xf32> to vector<2x32xf32>
    %23 = vector.extract_strided_slice %21 {offsets = [0, 32], sizes = [2, 32], strides = [1, 1]} : vector<2x96xf32> to vector<2x32xf32>
    %24 = vector.extract_strided_slice %21 {offsets = [0, 64], sizes = [2, 32], strides = [1, 1]} : vector<2x96xf32> to vector<2x32xf32>
    %25 = vector.extract_strided_slice %15 {offsets = [0, 96], sizes = [2, 32], strides = [1, 1]} : vector<2x128xf32> to vector<2x32xf32>
    %26 = math.tanh %25 : vector<2x32xf32>
    %c0_14 = arith.constant 0 : index
    %c0_15 = arith.constant 0 : index
    %27 = vector.load %arg8[%c0_14, %c0_15] : memref<2x32xf32, #tpu.memory_space<vmem>>, vector<2x32xf32>
    %28 = arith.mulf %23, %27 : vector<2x32xf32>
    %29 = arith.mulf %22, %26 : vector<2x32xf32>
    %30 = arith.addf %28, %29 : vector<2x32xf32>
    %31 = math.tanh %30 : vector<2x32xf32>
    %32 = arith.mulf %24, %31 : vector<2x32xf32>
    %c0_16 = arith.constant 0 : index
    %c0_17 = arith.constant 0 : index
    %33 = vector.load %arg8[%c0_16, %c0_17] : memref<2x32xf32, #tpu.memory_space<vmem>>, vector<2x32xf32>
    tpu.vector_store %arg8[%c0_16, %c0_17], %30 {strides = array<i32>} : memref<2x32xf32, #tpu.memory_space<vmem>>, vector<2x32xf32>,
    %c0_18 = arith.constant 0 : index
    %c0_19 = arith.constant 0 : index
    %34 = vector.load %arg7[%c0_18, %c0_19] : memref<2x32xf32, #tpu.memory_space<vmem>>, vector<2x32xf32>
    tpu.vector_store %arg7[%c0_18, %c0_19], %32 {strides = array<i32>} : memref<2x32xf32, #tpu.memory_space<vmem>>, vector<2x32xf32>,
    %c0_20 = arith.constant 0 : index
    %c0_21 = arith.constant 0 : index
    %c0_22 = arith.constant 0 : index
    %35 = vector.load %arg6[%c0_20, %c0_21, %c0_22] : memref<2x8x32xf32, #tpu.memory_space<vmem>>, vector<2x1x32xf32>
    %36 = vector.shape_cast %35 : vector<2x1x32xf32> to vector<2x32xf32>
    %37 = vector.shape_cast %32 : vector<2x32xf32> to vector<2x1x32xf32>
    tpu.vector_store %arg6[%c0_20, %c0_21, %c0_22], %37 {strides = array<i32>} : memref<2x8x32xf32, #tpu.memory_space<vmem>>, vector<2x1x32xf32>,
    %38 = vector.extract_strided_slice %10 {offsets = [2, 0], sizes = [2, 128], strides = [1, 1]} : vector<16x128xf32> to vector<2x128xf32>
    %c0_23 = arith.constant 0 : index
    %c0_24 = arith.constant 0 : index
    %39 = vector.load %arg7[%c0_23, %c0_24] : memref<2x32xf32, #tpu.memory_space<vmem>>, vector<2x32xf32>
    %40 = arith.truncf %39 : vector<2x32xf32> to vector<2x32xbf16>
    %cst_25 = arith.constant dense<0.000000e+00> : vector<2x128xf32>
    %41 = tpu.matmul %40, %4, %cst_25 {dimension_numbers = #tpu.dot_dimension_numbers<[1], [0], [0], [1], [0, 0, 1, 1], [], []>} : vector<2x32xbf16>, vector<32x128xbf16>, vector<2x128xf32> -> vector<2x128xf32>
    %42 = arith.addf %38, %41 : vector<2x128xf32>
    %43 = vector.extract_strided_slice %42 {offsets = [0, 0], sizes = [2, 96], strides = [1, 1]} : vector<2x128xf32> to vector<2x96xf32>
    %44 = arith.negf %43 : vector<2x96xf32>
    %45 = math.exp %44 : vector<2x96xf32>
    %cst_26 = arith.constant 1.000000e+00 : f32
    %46 = vector.broadcast %cst_26 : f32 to vector<2x96xf32>
    %47 = arith.addf %46, %45 : vector<2x96xf32>
    %48 = arith.divf %46, %47 : vector<2x96xf32>
    %49 = vector.extract_strided_slice %48 {offsets = [0, 0], sizes = [2, 32], strides = [1, 1]} : vector<2x96xf32> to vector<2x32xf32>
    %50 = vector.extract_strided_slice %48 {offsets = [0, 32], sizes = [2, 32], strides = [1, 1]} : vector<2x96xf32> to vector<2x32xf32>
    %51 = vector.extract_strided_slice %48 {offsets = [0, 64], sizes = [2, 32], strides = [1, 1]} : vector<2x96xf32> to vector<2x32xf32>
    %52 = vector.extract_strided_slice %42 {offsets = [0, 96], sizes = [2, 32], strides = [1, 1]} : vector<2x128xf32> to vector<2x32xf32>
    %53 = math.tanh %52 : vector<2x32xf32>
    %c0_27 = arith.constant 0 : index
    %c0_28 = arith.constant 0 : index
    %54 = vector.load %arg8[%c0_27, %c0_28] : memref<2x32xf32, #tpu.memory_space<vmem>>, vector<2x32xf32>
    %55 = arith.mulf %50, %54 : vector<2x32xf32>
    %56 = arith.mulf %49, %53 : vector<2x32xf32>
    %57 = arith.addf %55, %56 : vector<2x32xf32>
    %58 = math.tanh %57 : vector<2x32xf32>
    %59 = arith.mulf %51, %58 : vector<2x32xf32>
    %c0_29 = arith.constant 0 : index
    %c0_30 = arith.constant 0 : index
    %60 = vector.load %arg8[%c0_29, %c0_30] : memref<2x32xf32, #tpu.memory_space<vmem>>, vector<2x32xf32>
    tpu.vector_store %arg8[%c0_29, %c0_30], %57 {strides = array<i32>} : memref<2x32xf32, #tpu.memory_space<vmem>>, vector<2x32xf32>,
    %c0_31 = arith.constant 0 : index
    %c0_32 = arith.constant 0 : index
    %61 = vector.load %arg7[%c0_31, %c0_32] : memref<2x32xf32, #tpu.memory_space<vmem>>, vector<2x32xf32>
    tpu.vector_store %arg7[%c0_31, %c0_32], %59 {strides = array<i32>} : memref<2x32xf32, #tpu.memory_space<vmem>>, vector<2x32xf32>,
    %c0_33 = arith.constant 0 : index
    %c1 = arith.constant 1 : index
    %c0_34 = arith.constant 0 : index
    %62 = vector.load %arg6[%c0_33, %c1, %c0_34] : memref<2x8x32xf32, #tpu.memory_space<vmem>>, vector<2x1x32xf32>
    %63 = vector.shape_cast %62 : vector<2x1x32xf32> to vector<2x32xf32>
    %64 = vector.shape_cast %59 : vector<2x32xf32> to vector<2x1x32xf32>
    tpu.vector_store %arg6[%c0_33, %c1, %c0_34], %64 {strides = array<i32>} : memref<2x8x32xf32, #tpu.memory_space<vmem>>, vector<2x1x32xf32>,
    %65 = vector.extract_strided_slice %10 {offsets = [4, 0], sizes = [2, 128], strides = [1, 1]} : vector<16x128xf32> to vector<2x128xf32>
    %c0_35 = arith.constant 0 : index
    %c0_36 = arith.constant 0 : index
    %66 = vector.load %arg7[%c0_35, %c0_36] : memref<2x32xf32, #tpu.memory_space<vmem>>, vector<2x32xf32>
    %67 = arith.truncf %66 : vector<2x32xf32> to vector<2x32xbf16>
    %cst_37 = arith.constant dense<0.000000e+00> : vector<2x128xf32>
    %68 = tpu.matmul %67, %4, %cst_37 {dimension_numbers = #tpu.dot_dimension_numbers<[1], [0], [0], [1], [0, 0, 1, 1], [], []>} : vector<2x32xbf16>, vector<32x128xbf16>, vector<2x128xf32> -> vector<2x128xf32>
    %69 = arith.addf %65, %68 : vector<2x128xf32>
    %70 = vector.extract_strided_slice %69 {offsets = [0, 0], sizes = [2, 96], strides = [1, 1]} : vector<2x128xf32> to vector<2x96xf32>
    %71 = arith.negf %70 : vector<2x96xf32>
    %72 = math.exp %71 : vector<2x96xf32>
    %cst_38 = arith.constant 1.000000e+00 : f32
    %73 = vector.broadcast %cst_38 : f32 to vector<2x96xf32>
    %74 = arith.addf %73, %72 : vector<2x96xf32>
    %75 = arith.divf %73, %74 : vector<2x96xf32>
    %76 = vector.extract_strided_slice %75 {offsets = [0, 0], sizes = [2, 32], strides = [1, 1]} : vector<2x96xf32> to vector<2x32xf32>
    %77 = vector.extract_strided_slice %75 {offsets = [0, 32], sizes = [2, 32], strides = [1, 1]} : vector<2x96xf32> to vector<2x32xf32>
    %78 = vector.extract_strided_slice %75 {offsets = [0, 64], sizes = [2, 32], strides = [1, 1]} : vector<2x96xf32> to vector<2x32xf32>
    %79 = vector.extract_strided_slice %69 {offsets = [0, 96], sizes = [2, 32], strides = [1, 1]} : vector<2x128xf32> to vector<2x32xf32>
    %80 = math.tanh %79 : vector<2x32xf32>
    %c0_39 = arith.constant 0 : index
    %c0_40 = arith.constant 0 : index
    %81 = vector.load %arg8[%c0_39, %c0_40] : memref<2x32xf32, #tpu.memory_space<vmem>>, vector<2x32xf32>
    %82 = arith.mulf %77, %81 : vector<2x32xf32>
    %83 = arith.mulf %76, %80 : vector<2x32xf32>
    %84 = arith.addf %82, %83 : vector<2x32xf32>
    %85 = math.tanh %84 : vector<2x32xf32>
    %86 = arith.mulf %78, %85 : vector<2x32xf32>
    %c0_41 = arith.constant 0 : index
    %c0_42 = arith.constant 0 : index
    %87 = vector.load %arg8[%c0_41, %c0_42] : memref<2x32xf32, #tpu.memory_space<vmem>>, vector<2x32xf32>
    tpu.vector_store %arg8[%c0_41, %c0_42], %84 {strides = array<i32>} : memref<2x32xf32, #tpu.memory_space<vmem>>, vector<2x32xf32>,
    %c0_43 = arith.constant 0 : index
    %c0_44 = arith.constant 0 : index
    %88 = vector.load %arg7[%c0_43, %c0_44] : memref<2x32xf32, #tpu.memory_space<vmem>>, vector<2x32xf32>
    tpu.vector_store %arg7[%c0_43, %c0_44], %86 {strides = array<i32>} : memref<2x32xf32, #tpu.memory_space<vmem>>, vector<2x32xf32>,
    %c0_45 = arith.constant 0 : index
    %c2 = arith.constant 2 : index
    %c0_46 = arith.constant 0 : index
    %89 = vector.load %arg6[%c0_45, %c2, %c0_46] : memref<2x8x32xf32, #tpu.memory_space<vmem>>, vector<2x1x32xf32>
    %90 = vector.shape_cast %89 : vector<2x1x32xf32> to vector<2x32xf32>
    %91 = vector.shape_cast %86 : vector<2x32xf32> to vector<2x1x32xf32>
    tpu.vector_store %arg6[%c0_45, %c2, %c0_46], %91 {strides = array<i32>} : memref<2x8x32xf32, #tpu.memory_space<vmem>>, vector<2x1x32xf32>,
    %92 = vector.extract_strided_slice %10 {offsets = [6, 0], sizes = [2, 128], strides = [1, 1]} : vector<16x128xf32> to vector<2x128xf32>
    %c0_47 = arith.constant 0 : index
    %c0_48 = arith.constant 0 : index
    %93 = vector.load %arg7[%c0_47, %c0_48] : memref<2x32xf32, #tpu.memory_space<vmem>>, vector<2x32xf32>
    %94 = arith.truncf %93 : vector<2x32xf32> to vector<2x32xbf16>
    %cst_49 = arith.constant dense<0.000000e+00> : vector<2x128xf32>
    %95 = tpu.matmul %94, %4, %cst_49 {dimension_numbers = #tpu.dot_dimension_numbers<[1], [0], [0], [1], [0, 0, 1, 1], [], []>} : vector<2x32xbf16>, vector<32x128xbf16>, vector<2x128xf32> -> vector<2x128xf32>
    %96 = arith.addf %92, %95 : vector<2x128xf32>
    %97 = vector.extract_strided_slice %96 {offsets = [0, 0], sizes = [2, 96], strides = [1, 1]} : vector<2x128xf32> to vector<2x96xf32>
    %98 = arith.negf %97 : vector<2x96xf32>
    %99 = math.exp %98 : vector<2x96xf32>
    %cst_50 = arith.constant 1.000000e+00 : f32
    %100 = vector.broadcast %cst_50 : f32 to vector<2x96xf32>
    %101 = arith.addf %100, %99 : vector<2x96xf32>
    %102 = arith.divf %100, %101 : vector<2x96xf32>
    %103 = vector.extract_strided_slice %102 {offsets = [0, 0], sizes = [2, 32], strides = [1, 1]} : vector<2x96xf32> to vector<2x32xf32>
    %104 = vector.extract_strided_slice %102 {offsets = [0, 32], sizes = [2, 32], strides = [1, 1]} : vector<2x96xf32> to vector<2x32xf32>
    %105 = vector.extract_strided_slice %102 {offsets = [0, 64], sizes = [2, 32], strides = [1, 1]} : vector<2x96xf32> to vector<2x32xf32>
    %106 = vector.extract_strided_slice %96 {offsets = [0, 96], sizes = [2, 32], strides = [1, 1]} : vector<2x128xf32> to vector<2x32xf32>
    %107 = math.tanh %106 : vector<2x32xf32>
    %c0_51 = arith.constant 0 : index
    %c0_52 = arith.constant 0 : index
    %108 = vector.load %arg8[%c0_51, %c0_52] : memref<2x32xf32, #tpu.memory_space<vmem>>, vector<2x32xf32>
    %109 = arith.mulf %104, %108 : vector<2x32xf32>
    %110 = arith.mulf %103, %107 : vector<2x32xf32>
    %111 = arith.addf %109, %110 : vector<2x32xf32>
    %112 = math.tanh %111 : vector<2x32xf32>
    %113 = arith.mulf %105, %112 : vector<2x32xf32>
    %c0_53 = arith.constant 0 : index
    %c0_54 = arith.constant 0 : index
    %114 = vector.load %arg8[%c0_53, %c0_54] : memref<2x32xf32, #tpu.memory_space<vmem>>, vector<2x32xf32>
    tpu.vector_store %arg8[%c0_53, %c0_54], %111 {strides = array<i32>} : memref<2x32xf32, #tpu.memory_space<vmem>>, vector<2x32xf32>,
    %c0_55 = arith.constant 0 : index
    %c0_56 = arith.constant 0 : index
    %115 = vector.load %arg7[%c0_55, %c0_56] : memref<2x32xf32, #tpu.memory_space<vmem>>, vector<2x32xf32>
    tpu.vector_store %arg7[%c0_55, %c0_56], %113 {strides = array<i32>} : memref<2x32xf32, #tpu.memory_space<vmem>>, vector<2x32xf32>,
    %c0_57 = arith.constant 0 : index
    %c3 = arith.constant 3 : index
    %c0_58 = arith.constant 0 : index
    %116 = vector.load %arg6[%c0_57, %c3, %c0_58] : memref<2x8x32xf32, #tpu.memory_space<vmem>>, vector<2x1x32xf32>
    %117 = vector.shape_cast %116 : vector<2x1x32xf32> to vector<2x32xf32>
    %118 = vector.shape_cast %113 : vector<2x32xf32> to vector<2x1x32xf32>
    tpu.vector_store %arg6[%c0_57, %c3, %c0_58], %118 {strides = array<i32>} : memref<2x8x32xf32, #tpu.memory_space<vmem>>, vector<2x1x32xf32>,
    %119 = vector.extract_strided_slice %10 {offsets = [8, 0], sizes = [2, 128], strides = [1, 1]} : vector<16x128xf32> to vector<2x128xf32>
    %c0_59 = arith.constant 0 : index
    %c0_60 = arith.constant 0 : index
    %120 = vector.load %arg7[%c0_59, %c0_60] : memref<2x32xf32, #tpu.memory_space<vmem>>, vector<2x32xf32>
    %121 = arith.truncf %120 : vector<2x32xf32> to vector<2x32xbf16>
    %cst_61 = arith.constant dense<0.000000e+00> : vector<2x128xf32>
    %122 = tpu.matmul %121, %4, %cst_61 {dimension_numbers = #tpu.dot_dimension_numbers<[1], [0], [0], [1], [0, 0, 1, 1], [], []>} : vector<2x32xbf16>, vector<32x128xbf16>, vector<2x128xf32> -> vector<2x128xf32>
    %123 = arith.addf %119, %122 : vector<2x128xf32>
    %124 = vector.extract_strided_slice %123 {offsets = [0, 0], sizes = [2, 96], strides = [1, 1]} : vector<2x128xf32> to vector<2x96xf32>
    %125 = arith.negf %124 : vector<2x96xf32>
    %126 = math.exp %125 : vector<2x96xf32>
    %cst_62 = arith.constant 1.000000e+00 : f32
    %127 = vector.broadcast %cst_62 : f32 to vector<2x96xf32>
    %128 = arith.addf %127, %126 : vector<2x96xf32>
    %129 = arith.divf %127, %128 : vector<2x96xf32>
    %130 = vector.extract_strided_slice %129 {offsets = [0, 0], sizes = [2, 32], strides = [1, 1]} : vector<2x96xf32> to vector<2x32xf32>
    %131 = vector.extract_strided_slice %129 {offsets = [0, 32], sizes = [2, 32], strides = [1, 1]} : vector<2x96xf32> to vector<2x32xf32>
    %132 = vector.extract_strided_slice %129 {offsets = [0, 64], sizes = [2, 32], strides = [1, 1]} : vector<2x96xf32> to vector<2x32xf32>
    %133 = vector.extract_strided_slice %123 {offsets = [0, 96], sizes = [2, 32], strides = [1, 1]} : vector<2x128xf32> to vector<2x32xf32>
    %134 = math.tanh %133 : vector<2x32xf32>
    %c0_63 = arith.constant 0 : index
    %c0_64 = arith.constant 0 : index
    %135 = vector.load %arg8[%c0_63, %c0_64] : memref<2x32xf32, #tpu.memory_space<vmem>>, vector<2x32xf32>
    %136 = arith.mulf %131, %135 : vector<2x32xf32>
    %137 = arith.mulf %130, %134 : vector<2x32xf32>
    %138 = arith.addf %136, %137 : vector<2x32xf32>
    %139 = math.tanh %138 : vector<2x32xf32>
    %140 = arith.mulf %132, %139 : vector<2x32xf32>
    %c0_65 = arith.constant 0 : index
    %c0_66 = arith.constant 0 : index
    %141 = vector.load %arg8[%c0_65, %c0_66] : memref<2x32xf32, #tpu.memory_space<vmem>>, vector<2x32xf32>
    tpu.vector_store %arg8[%c0_65, %c0_66], %138 {strides = array<i32>} : memref<2x32xf32, #tpu.memory_space<vmem>>, vector<2x32xf32>,
    %c0_67 = arith.constant 0 : index
    %c0_68 = arith.constant 0 : index
    %142 = vector.load %arg7[%c0_67, %c0_68] : memref<2x32xf32, #tpu.memory_space<vmem>>, vector<2x32xf32>
    tpu.vector_store %arg7[%c0_67, %c0_68], %140 {strides = array<i32>} : memref<2x32xf32, #tpu.memory_space<vmem>>, vector<2x32xf32>,
    %c0_69 = arith.constant 0 : index
    %c4 = arith.constant 4 : index
    %c0_70 = arith.constant 0 : index
    %143 = vector.load %arg6[%c0_69, %c4, %c0_70] : memref<2x8x32xf32, #tpu.memory_space<vmem>>, vector<2x1x32xf32>
    %144 = vector.shape_cast %143 : vector<2x1x32xf32> to vector<2x32xf32>
    %145 = vector.shape_cast %140 : vector<2x32xf32> to vector<2x1x32xf32>
    tpu.vector_store %arg6[%c0_69, %c4, %c0_70], %145 {strides = array<i32>} : memref<2x8x32xf32, #tpu.memory_space<vmem>>, vector<2x1x32xf32>,
    %146 = vector.extract_strided_slice %10 {offsets = [10, 0], sizes = [2, 128], strides = [1, 1]} : vector<16x128xf32> to vector<2x128xf32>
    %c0_71 = arith.constant 0 : index
    %c0_72 = arith.constant 0 : index
    %147 = vector.load %arg7[%c0_71, %c0_72] : memref<2x32xf32, #tpu.memory_space<vmem>>, vector<2x32xf32>
    %148 = arith.truncf %147 : vector<2x32xf32> to vector<2x32xbf16>
    %cst_73 = arith.constant dense<0.000000e+00> : vector<2x128xf32>
    %149 = tpu.matmul %148, %4, %cst_73 {dimension_numbers = #tpu.dot_dimension_numbers<[1], [0], [0], [1], [0, 0, 1, 1], [], []>} : vector<2x32xbf16>, vector<32x128xbf16>, vector<2x128xf32> -> vector<2x128xf32>
    %150 = arith.addf %146, %149 : vector<2x128xf32>
    %151 = vector.extract_strided_slice %150 {offsets = [0, 0], sizes = [2, 96], strides = [1, 1]} : vector<2x128xf32> to vector<2x96xf32>
    %152 = arith.negf %151 : vector<2x96xf32>
    %153 = math.exp %152 : vector<2x96xf32>
    %cst_74 = arith.constant 1.000000e+00 : f32
    %154 = vector.broadcast %cst_74 : f32 to vector<2x96xf32>
    %155 = arith.addf %154, %153 : vector<2x96xf32>
    %156 = arith.divf %154, %155 : vector<2x96xf32>
    %157 = vector.extract_strided_slice %156 {offsets = [0, 0], sizes = [2, 32], strides = [1, 1]} : vector<2x96xf32> to vector<2x32xf32>
    %158 = vector.extract_strided_slice %156 {offsets = [0, 32], sizes = [2, 32], strides = [1, 1]} : vector<2x96xf32> to vector<2x32xf32>
    %159 = vector.extract_strided_slice %156 {offsets = [0, 64], sizes = [2, 32], strides = [1, 1]} : vector<2x96xf32> to vector<2x32xf32>
    %160 = vector.extract_strided_slice %150 {offsets = [0, 96], sizes = [2, 32], strides = [1, 1]} : vector<2x128xf32> to vector<2x32xf32>
    %161 = math.tanh %160 : vector<2x32xf32>
    %c0_75 = arith.constant 0 : index
    %c0_76 = arith.constant 0 : index
    %162 = vector.load %arg8[%c0_75, %c0_76] : memref<2x32xf32, #tpu.memory_space<vmem>>, vector<2x32xf32>
    %163 = arith.mulf %158, %162 : vector<2x32xf32>
    %164 = arith.mulf %157, %161 : vector<2x32xf32>
    %165 = arith.addf %163, %164 : vector<2x32xf32>
    %166 = math.tanh %165 : vector<2x32xf32>
    %167 = arith.mulf %159, %166 : vector<2x32xf32>
    %c0_77 = arith.constant 0 : index
    %c0_78 = arith.constant 0 : index
    %168 = vector.load %arg8[%c0_77, %c0_78] : memref<2x32xf32, #tpu.memory_space<vmem>>, vector<2x32xf32>
    tpu.vector_store %arg8[%c0_77, %c0_78], %165 {strides = array<i32>} : memref<2x32xf32, #tpu.memory_space<vmem>>, vector<2x32xf32>,
    %c0_79 = arith.constant 0 : index
    %c0_80 = arith.constant 0 : index
    %169 = vector.load %arg7[%c0_79, %c0_80] : memref<2x32xf32, #tpu.memory_space<vmem>>, vector<2x32xf32>
    tpu.vector_store %arg7[%c0_79, %c0_80], %167 {strides = array<i32>} : memref<2x32xf32, #tpu.memory_space<vmem>>, vector<2x32xf32>,
    %c0_81 = arith.constant 0 : index
    %c5 = arith.constant 5 : index
    %c0_82 = arith.constant 0 : index
    %170 = vector.load %arg6[%c0_81, %c5, %c0_82] : memref<2x8x32xf32, #tpu.memory_space<vmem>>, vector<2x1x32xf32>
    %171 = vector.shape_cast %170 : vector<2x1x32xf32> to vector<2x32xf32>
    %172 = vector.shape_cast %167 : vector<2x32xf32> to vector<2x1x32xf32>
    tpu.vector_store %arg6[%c0_81, %c5, %c0_82], %172 {strides = array<i32>} : memref<2x8x32xf32, #tpu.memory_space<vmem>>, vector<2x1x32xf32>,
    %173 = vector.extract_strided_slice %10 {offsets = [12, 0], sizes = [2, 128], strides = [1, 1]} : vector<16x128xf32> to vector<2x128xf32>
    %c0_83 = arith.constant 0 : index
    %c0_84 = arith.constant 0 : index
    %174 = vector.load %arg7[%c0_83, %c0_84] : memref<2x32xf32, #tpu.memory_space<vmem>>, vector<2x32xf32>
    %175 = arith.truncf %174 : vector<2x32xf32> to vector<2x32xbf16>
    %cst_85 = arith.constant dense<0.000000e+00> : vector<2x128xf32>
    %176 = tpu.matmul %175, %4, %cst_85 {dimension_numbers = #tpu.dot_dimension_numbers<[1], [0], [0], [1], [0, 0, 1, 1], [], []>} : vector<2x32xbf16>, vector<32x128xbf16>, vector<2x128xf32> -> vector<2x128xf32>
    %177 = arith.addf %173, %176 : vector<2x128xf32>
    %178 = vector.extract_strided_slice %177 {offsets = [0, 0], sizes = [2, 96], strides = [1, 1]} : vector<2x128xf32> to vector<2x96xf32>
    %179 = arith.negf %178 : vector<2x96xf32>
    %180 = math.exp %179 : vector<2x96xf32>
    %cst_86 = arith.constant 1.000000e+00 : f32
    %181 = vector.broadcast %cst_86 : f32 to vector<2x96xf32>
    %182 = arith.addf %181, %180 : vector<2x96xf32>
    %183 = arith.divf %181, %182 : vector<2x96xf32>
    %184 = vector.extract_strided_slice %183 {offsets = [0, 0], sizes = [2, 32], strides = [1, 1]} : vector<2x96xf32> to vector<2x32xf32>
    %185 = vector.extract_strided_slice %183 {offsets = [0, 32], sizes = [2, 32], strides = [1, 1]} : vector<2x96xf32> to vector<2x32xf32>
    %186 = vector.extract_strided_slice %183 {offsets = [0, 64], sizes = [2, 32], strides = [1, 1]} : vector<2x96xf32> to vector<2x32xf32>
    %187 = vector.extract_strided_slice %177 {offsets = [0, 96], sizes = [2, 32], strides = [1, 1]} : vector<2x128xf32> to vector<2x32xf32>
    %188 = math.tanh %187 : vector<2x32xf32>
    %c0_87 = arith.constant 0 : index
    %c0_88 = arith.constant 0 : index
    %189 = vector.load %arg8[%c0_87, %c0_88] : memref<2x32xf32, #tpu.memory_space<vmem>>, vector<2x32xf32>
    %190 = arith.mulf %185, %189 : vector<2x32xf32>
    %191 = arith.mulf %184, %188 : vector<2x32xf32>
    %192 = arith.addf %190, %191 : vector<2x32xf32>
    %193 = math.tanh %192 : vector<2x32xf32>
    %194 = arith.mulf %186, %193 : vector<2x32xf32>
    %c0_89 = arith.constant 0 : index
    %c0_90 = arith.constant 0 : index
    %195 = vector.load %arg8[%c0_89, %c0_90] : memref<2x32xf32, #tpu.memory_space<vmem>>, vector<2x32xf32>
    tpu.vector_store %arg8[%c0_89, %c0_90], %192 {strides = array<i32>} : memref<2x32xf32, #tpu.memory_space<vmem>>, vector<2x32xf32>,
    %c0_91 = arith.constant 0 : index
    %c0_92 = arith.constant 0 : index
    %196 = vector.load %arg7[%c0_91, %c0_92] : memref<2x32xf32, #tpu.memory_space<vmem>>, vector<2x32xf32>
    tpu.vector_store %arg7[%c0_91, %c0_92], %194 {strides = array<i32>} : memref<2x32xf32, #tpu.memory_space<vmem>>, vector<2x32xf32>,
    %c0_93 = arith.constant 0 : index
    %c6 = arith.constant 6 : index
    %c0_94 = arith.constant 0 : index
    %197 = vector.load %arg6[%c0_93, %c6, %c0_94] : memref<2x8x32xf32, #tpu.memory_space<vmem>>, vector<2x1x32xf32>
    %198 = vector.shape_cast %197 : vector<2x1x32xf32> to vector<2x32xf32>
    %199 = vector.shape_cast %194 : vector<2x32xf32> to vector<2x1x32xf32>
    tpu.vector_store %arg6[%c0_93, %c6, %c0_94], %199 {strides = array<i32>} : memref<2x8x32xf32, #tpu.memory_space<vmem>>, vector<2x1x32xf32>,
    %200 = vector.extract_strided_slice %10 {offsets = [14, 0], sizes = [2, 128], strides = [1, 1]} : vector<16x128xf32> to vector<2x128xf32>
    %c0_95 = arith.constant 0 : index
    %c0_96 = arith.constant 0 : index
    %201 = vector.load %arg7[%c0_95, %c0_96] : memref<2x32xf32, #tpu.memory_space<vmem>>, vector<2x32xf32>
    %202 = arith.truncf %201 : vector<2x32xf32> to vector<2x32xbf16>
    %cst_97 = arith.constant dense<0.000000e+00> : vector<2x128xf32>
    %203 = tpu.matmul %202, %4, %cst_97 {dimension_numbers = #tpu.dot_dimension_numbers<[1], [0], [0], [1], [0, 0, 1, 1], [], []>} : vector<2x32xbf16>, vector<32x128xbf16>, vector<2x128xf32> -> vector<2x128xf32>
    %204 = arith.addf %200, %203 : vector<2x128xf32>
    %205 = vector.extract_strided_slice %204 {offsets = [0, 0], sizes = [2, 96], strides = [1, 1]} : vector<2x128xf32> to vector<2x96xf32>
    %206 = arith.negf %205 : vector<2x96xf32>
    %207 = math.exp %206 : vector<2x96xf32>
    %cst_98 = arith.constant 1.000000e+00 : f32
    %208 = vector.broadcast %cst_98 : f32 to vector<2x96xf32>
    %209 = arith.addf %208, %207 : vector<2x96xf32>
    %210 = arith.divf %208, %209 : vector<2x96xf32>
    %211 = vector.extract_strided_slice %210 {offsets = [0, 0], sizes = [2, 32], strides = [1, 1]} : vector<2x96xf32> to vector<2x32xf32>
    %212 = vector.extract_strided_slice %210 {offsets = [0, 32], sizes = [2, 32], strides = [1, 1]} : vector<2x96xf32> to vector<2x32xf32>
    %213 = vector.extract_strided_slice %210 {offsets = [0, 64], sizes = [2, 32], strides = [1, 1]} : vector<2x96xf32> to vector<2x32xf32>
    %214 = vector.extract_strided_slice %204 {offsets = [0, 96], sizes = [2, 32], strides = [1, 1]} : vector<2x128xf32> to vector<2x32xf32>
    %215 = math.tanh %214 : vector<2x32xf32>
    %c0_99 = arith.constant 0 : index
    %c0_100 = arith.constant 0 : index
    %216 = vector.load %arg8[%c0_99, %c0_100] : memref<2x32xf32, #tpu.memory_space<vmem>>, vector<2x32xf32>
    %217 = arith.mulf %212, %216 : vector<2x32xf32>
    %218 = arith.mulf %211, %215 : vector<2x32xf32>
    %219 = arith.addf %217, %218 : vector<2x32xf32>
    %220 = math.tanh %219 : vector<2x32xf32>
    %221 = arith.mulf %213, %220 : vector<2x32xf32>
    %c0_101 = arith.constant 0 : index
    %c0_102 = arith.constant 0 : index
    %222 = vector.load %arg8[%c0_101, %c0_102] : memref<2x32xf32, #tpu.memory_space<vmem>>, vector<2x32xf32>
    tpu.vector_store %arg8[%c0_101, %c0_102], %219 {strides = array<i32>} : memref<2x32xf32, #tpu.memory_space<vmem>>, vector<2x32xf32>,
    %c0_103 = arith.constant 0 : index
    %c0_104 = arith.constant 0 : index
    %223 = vector.load %arg7[%c0_103, %c0_104] : memref<2x32xf32, #tpu.memory_space<vmem>>, vector<2x32xf32>
    tpu.vector_store %arg7[%c0_103, %c0_104], %221 {strides = array<i32>} : memref<2x32xf32, #tpu.memory_space<vmem>>, vector<2x32xf32>,
    %c0_105 = arith.constant 0 : index
    %c7 = arith.constant 7 : index
    %c0_106 = arith.constant 0 : index
    %224 = vector.load %arg6[%c0_105, %c7, %c0_106] : memref<2x8x32xf32, #tpu.memory_space<vmem>>, vector<2x1x32xf32>
    %225 = vector.shape_cast %224 : vector<2x1x32xf32> to vector<2x32xf32>
    %226 = vector.shape_cast %221 : vector<2x32xf32> to vector<2x1x32xf32>
    tpu.vector_store %arg6[%c0_105, %c7, %c0_106], %226 {strides = array<i32>} : memref<2x8x32xf32, #tpu.memory_space<vmem>>, vector<2x1x32xf32>,
    return
  }
  func.func @transform_0(%arg0: i32, %arg1: i32) -> (i32, i32, i32, i32) {
    %c0_i32 = arith.constant 0 : i32
    %c0_i32_0 = arith.constant 0 : i32
    %c0_i32_1 = arith.constant 0 : i32
    return %arg0, %arg1, %c0_i32, %c0_i32_0 : i32, i32, i32, i32
  }
  func.func @transform_1(%arg0: i32, %arg1: i32) -> (i32, i32) {
    %c0_i32 = arith.constant 0 : i32
    %c0_i32_0 = arith.constant 0 : i32
    %c0_i32_1 = arith.constant 0 : i32
    return %c0_i32, %c0_i32_0 : i32, i32
  }
  func.func @transform_2(%arg0: i32, %arg1: i32) -> (i32, i32) {
    %c0_i32 = arith.constant 0 : i32
    %c0_i32_0 = arith.constant 0 : i32
    %c0_i32_1 = arith.constant 0 : i32
    return %c0_i32, %c0_i32_0 : i32, i32
  }
  func.func @transform_3(%arg0: i32, %arg1: i32) -> (i32, i32) {
    %c0_i32 = arith.constant 0 : i32
    %c0_i32_0 = arith.constant 0 : i32
    %c0_i32_1 = arith.constant 0 : i32
    return %c0_i32, %c0_i32_0 : i32, i32
  }
  func.func @transform_4(%arg0: i32, %arg1: i32) -> (i32, i32, i32) {
    %c0_i32 = arith.constant 0 : i32
    %c0_i32_0 = arith.constant 0 : i32
    return %arg0, %arg1, %c0_i32 : i32, i32, i32
  }
}

</mosaic_0001>

<llo_original>
// kernel: tpu_custom_call.1
$region0: #{tpu_custom_call.1}
  #allocation0 [shape = 'u32[]', space=smem, size = 0x4, offset = 0x4, fixed_abs, tag = 'smem constant byte address 0x4 - core index']
  #allocation1 [shape = 'u32[144,128]{1,0:T(1,128)}', space=vmem, size = 0x12000, scoped, tag = 'internal scratch']
  #allocation2 [shape = 'f32[2,32]{1,0:T(2,128)}', space=vmem, size = 0x400, scoped, tag = 'scratch operand']
  #allocation3 [shape = 'f32[2,32]{1,0:T(2,128)}', space=vmem, size = 0x400, scoped, tag = 'scratch operand']
  %s0 = inlined_call_operand.hbm [shape: bf16[1,1,16,16], index: 0, kind: input, shape index: {}]
  %s1 = inlined_call_operand.hbm [shape: bf16[16,128], index: 1, kind: input, shape index: {}]
  %s2 = inlined_call_operand.hbm [shape: bf16[32,128], index: 2, kind: input, shape index: {}]
  %s3 = inlined_call_operand.vmem [shape: f32[1,128], index: 3, kind: input, shape index: {}]
  %s4 = inlined_call_operand.hbm [shape: f32[2,8,32], index: 4, kind: output, shape index: {}]
  %s5 = sld [smem:[#allocation0]]
  $region42: #{tpu_custom_call.1} parent=0
    _
  %s7 = ssub.s32 1, %s5
  %s8 = scalar_select 0, %s7, %s5
  $region1: #{tpu_custom_call.1} parent=0
    #allocation4 [shape = 'u8[4096]{0}', space=vmem, size = 0x1000, scoped, tag = 'input window, operand 0, single buffered']
    #allocation5 [shape = 's32[1]{0}', space=sflag, size = 0x4, scoped, tag = 'scoped memory for tpu_custom_call.1']
    #allocation6 [shape = 's32[1]{0}', space=sflag, size = 0x4, scoped, tag = 'scoped memory for tpu_custom_call.1']
    #allocation7 [shape = 'u8[4096]{0}', space=vmem, size = 0x1000, scoped, tag = 'input window, operand 1, single buffered']
    #allocation8 [shape = 's32[1]{0}', space=sflag, size = 0x4, scoped, tag = 'scoped memory for tpu_custom_call.1']
    #allocation9 [shape = 'u8[8192]{0}', space=vmem, size = 0x2000, scoped, tag = 'input window, operand 2, single buffered']
    #allocation10 [shape = 'u8[8192]{0}', space=vmem, size = 0x2000, scoped, tag = 'output window, operand 0, single buffered']
    %9 = vsyncpa [#allocation5], 0
    %10 = vsyncpa [#allocation8], 0
    %11 = vsyncpa [#allocation6], 0
    // Predicated region
    $region2: #{tpu_custom_call.1} parent=1 // pred_check
      _
    $region3: #{tpu_custom_call.1} parent=1 // pred_check_branch
      %13 = sbr.rel (0) target = $region5
    $region4: #{tpu_custom_call.1} parent=1 // pred_region
      %s15 = ssub.s32 128, 128
      %16 = vsyncadd [#allocation5], %s15
      %s17 = sshll.u32 [#allocation4], 4
      %s18 = int_to_ptr.vmem [resolvable:$true] %s17
      %23 = dma.hbm_to_vmem [thread:$0]  %s0, 128, %s18, [#allocation5], 64, 64, 4
    $region5: #{tpu_custom_call.1} parent=1 // pred_fallthru
      _
    // Predicated region
    $region6: #{tpu_custom_call.1} parent=1 // pred_check
      _
    $region7: #{tpu_custom_call.1} parent=1 // pred_check_branch
      %25 = sbr.rel (0) target = $region9
    $region8: #{tpu_custom_call.1} parent=1 // pred_region
      %s27 = ssub.s32 128, 128
      %28 = vsyncadd [#allocation8], %s27
      %s29 = sshll.u32 [#allocation7], 4
      %s30 = int_to_ptr.vmem [resolvable:$true] %s29
      %35 = dma.hbm_to_vmem [thread:$0]  %s1, 128, %s30, [#allocation8], 64, 64, 4
    $region9: #{tpu_custom_call.1} parent=1 // pred_fallthru
      _
    // Predicated region
    $region10: #{tpu_custom_call.1} parent=1 // pred_check
      _
    $region11: #{tpu_custom_call.1} parent=1 // pred_check_branch
      %37 = sbr.rel (0) target = $region13
    $region12: #{tpu_custom_call.1} parent=1 // pred_region
      %s39 = ssub.s32 256, 256
      %40 = vsyncadd [#allocation8], %s39
      %s41 = sshll.u32 [#allocation9], 4
      %s42 = int_to_ptr.vmem [resolvable:$true] %s41
      %47 = dma.hbm_to_vmem [thread:$0]  %s2, 256, %s42, [#allocation8], 64, 64, 4
    $region13: #{tpu_custom_call.1} parent=1 // pred_fallthru
      _
    // Predicated region
    $region14: #{tpu_custom_call.1} parent=1 // pred_check
      _
    $region15: #{tpu_custom_call.1} parent=1 // pred_check_branch
      %49 = sbr.rel (0) target = $region17
    $region16: #{tpu_custom_call.1} parent=1 // pred_region
      _
    $region17: #{tpu_custom_call.1} parent=1 // pred_fallthru
      _
    // Predicated region
    $region18: #{tpu_custom_call.1} parent=1 // pred_check
      _
    $region19: #{tpu_custom_call.1} parent=1 // pred_check_branch
      %51 = sbr.rel (0) target = $region21
    $region20: #{tpu_custom_call.1} parent=1 // pred_region
      %52 = dma.done [#allocation5], 128
    $region21: #{tpu_custom_call.1} parent=1 // pred_fallthru
      _
    // Predicated region
    $region22: #{tpu_custom_call.1} parent=1 // pred_check
      _
    $region23: #{tpu_custom_call.1} parent=1 // pred_check_branch
      %54 = sbr.rel (0) target = $region25
    $region24: #{tpu_custom_call.1} parent=1 // pred_region
      %55 = dma.done [#allocation8], 128
    $region25: #{tpu_custom_call.1} parent=1 // pred_fallthru
      _
    // Predicated region
    $region26: #{tpu_custom_call.1} parent=1 // pred_check
      _
    $region27: #{tpu_custom_call.1} parent=1 // pred_check_branch
      %57 = sbr.rel (0) target = $region29
    $region28: #{tpu_custom_call.1} parent=1 // pred_region
      %58 = dma.done [#allocation8], 256
    $region29: #{tpu_custom_call.1} parent=1 // pred_fallthru
      _
    %p60 = scmp.eq.s32.totalorder 0, 0
    // Predicated region
    $region30: #{tpu_custom_call.1} parent=1 // pred_check
      %p61 = pneg %p60
    $region31: #{tpu_custom_call.1} parent=1 // pred_check_branch
      %63 = sbr.rel (%p61) target = $region33
    $region32: #{tpu_custom_call.1} parent=1 // pred_region
      %vm64 = vcmask 254976
      %65 = vst.msk [vmem:[#allocation2] sm:$0x3] %vm64, 0.0
      %66 = vst.msk [vmem:[#allocation3] sm:$0x3] %vm64, 0.0
    $region33: #{tpu_custom_call.1} parent=1 // pred_fallthru
      _
    %v67 = vld [vmem:[#allocation7] sm:$0xf]
    %v68 = vld [vmem:[#allocation7 + $0x4] sm:$0xf]
    %v69 = vld [vmem:[#allocation9] sm:$0xf]
    %v70 = vld [vmem:[#allocation9 + $0x4] sm:$0xf]
    %v71 = vld [vmem:[#allocation9 + $0x8] sm:$0xf]
    %v72 = vld [vmem:[#allocation9 + $0xc] sm:$0xf]
    %v73 = vld [vmem:[%s3] sm:$0x1]
    %v74 = vld [vmem:[#allocation4] sm:$0xf]
    %v75 = vld [vmem:[#allocation4 + $0x4] sm:$0xf]
    %v77 = vlaneseq
    %v78 = vshrl.u32 %v77, 7
    %v79 = vsub.s32 0, %v78
    %v80 = vrot.slane %v73, %v79
    %v84 = vunpack.c.l.b16 %v74
    %v85 = vunpack.c.l.b16 %v75
    %v86 = vpack.c.b16 %v85, %v84
    %v89 = vunpack.c.l.b16 %v67
    %v90 = vunpack.c.l.b16 %v68
    %v91 = vpack.c.b16 %v90, %v89
    %vm93 = vcmask 130048
    %v95 = vsel %vm93, %v86, 0
    %97 = vmatprep.subr.bf16.mxu0 0
    %98 = vmatpush1.bf16.msra.mxu0 %v91
    %99 = vmatprep.subr.bf16.mxu0 0
    %100 = vmatpush1.bf16.msra.mxu0 0
    %101 = vmatprep.subr.bf16.mxu0 0
    %102 = vmatpush1.bf16.msra.mxu0 0
    %103 = vmatprep.subr.bf16.mxu0 0
    %104 = vmatpush1.bf16.msra.mxu0 0
    %105 = vmatprep.subr.bf16.mxu0 0
    %106 = vmatpush1.bf16.msra.mxu0 0
    %107 = vmatprep.subr.bf16.mxu0 0
    %108 = vmatpush1.bf16.msra.mxu0 0
    %109 = vmatprep.subr.bf16.mxu0 0
    %110 = vmatpush1.bf16.msra.mxu0 0
    %111 = vmatprep.subr.bf16.mxu0 0
    %112 = vmatpush1.bf16.msra.mxu0 0
    %113 = vmatprep.subr.bf16.mxu0 0
    %114 = vmatpush1.bf16.msra.mxu0 0
    %115 = vmatprep.subr.bf16.mxu0 0
    %116 = vmatpush1.bf16.msra.mxu0 0
    %117 = vmatprep.subr.bf16.mxu0 0
    %118 = vmatpush1.bf16.msra.mxu0 0
    %119 = vmatprep.subr.bf16.mxu0 0
    %120 = vmatpush1.bf16.msra.mxu0 0
    %121 = vmatprep.subr.bf16.mxu0 0
    %122 = vmatpush1.bf16.msra.mxu0 0
    %123 = vmatprep.subr.bf16.mxu0 0
    %124 = vmatpush1.bf16.msra.mxu0 0
    %125 = vmatprep.subr.bf16.mxu0 0
    %126 = vmatpush1.bf16.msra.mxu0 0
    %127 = vmatprep.subr.bf16.mxu0 0
    %128 = vmatpush1.bf16.msra.mxu0 0
    %129 = vmatprep.mubr.bf16.mxu0 0
    %130 = vmatmul.mubr.bf16.gmra.mrb[0].mxu0 %v95
    %v131 = vpop.f32.mrb[0].mxu0
    %v132 = vadd.f32 %v80, %v131
    %v133 = vpop.f32.mrb[0].mxu0
    %v134 = vpop.f32.mrb[0].mxu0
    %v135 = vadd.f32 %v80, %v134
    %v136 = vpop.f32.mrb[0].mxu0
    %137 = vdwg.mxu0
    %v138 = vld [vmem:[#allocation2] sm:$0x3]
    %v139 = vpack.c.bf16 %v138, %v138
    %v144 = vunpack.c.l.b16 %v69
    %v145 = vunpack.c.l.b16 %v70
    %v146 = vunpack.c.l.b16 %v71
    %v147 = vunpack.c.l.b16 %v72
    %v148 = vpack.c.b16 %v145, %v144
    %v149 = vpack.c.b16 %v147, %v146
    %vm152 = vcmask 261120
    %v154 = vsel %vm152, %v139, 0
    %156 = vmatprep.subr.bf16.mxu0 0
    %157 = vmatpush1.bf16.msra.mxu0 %v148
    %158 = vmatprep.subr.bf16.mxu0 0
    %159 = vmatpush1.bf16.msra.mxu0 %v149
    %160 = vmatprep.subr.bf16.mxu0 0
    %161 = vmatpush1.bf16.msra.mxu0 0
    %162 = vmatprep.subr.bf16.mxu0 0
    %163 = vmatpush1.bf16.msra.mxu0 0
    %164 = vmatprep.subr.bf16.mxu0 0
    %165 = vmatpush1.bf16.msra.mxu0 0
    %166 = vmatprep.subr.bf16.mxu0 0
    %167 = vmatpush1.bf16.msra.mxu0 0
    %168 = vmatprep.subr.bf16.mxu0 0
    %169 = vmatpush1.bf16.msra.mxu0 0
    %170 = vmatprep.subr.bf16.mxu0 0
    %171 = vmatpush1.bf16.msra.mxu0 0
    %172 = vmatprep.subr.bf16.mxu0 0
    %173 = vmatpush1.bf16.msra.mxu0 0
    %174 = vmatprep.subr.bf16.mxu0 0
    %175 = vmatpush1.bf16.msra.mxu0 0
    %176 = vmatprep.subr.bf16.mxu0 0
    %177 = vmatpush1.bf16.msra.mxu0 0
    %178 = vmatprep.subr.bf16.mxu0 0
    %179 = vmatpush1.bf16.msra.mxu0 0
    %180 = vmatprep.subr.bf16.mxu0 0
    %181 = vmatpush1.bf16.msra.mxu0 0
    %182 = vmatprep.subr.bf16.mxu0 0
    %183 = vmatpush1.bf16.msra.mxu0 0
    %184 = vmatprep.subr.bf16.mxu0 0
    %185 = vmatpush1.bf16.msra.mxu0 0
    %186 = vmatprep.subr.bf16.mxu0 0
    %187 = vmatpush1.bf16.msra.mxu0 0
    %188 = vmatprep.mubr.bf16.mxu0 0
    %189 = vmatmul.mubr.bf16.gmra.mrb[0].mxu0 %v154
    %v190 = vpop.f32.mrb[0].mxu0
    %v191 = vadd.f32 0.0, %v190
    %v192 = vpop.f32.mrb[0].mxu0
    %v193 = vpop.f32.mrb[0].mxu0
    %v194 = vpop.f32.mrb[0].mxu0
    %195 = vdwg.mxu0
    %v196 = vadd.f32 %v132, %v191
    %v197 = vxor.u32 %v196, 2147483648
    %v198 = vmul.f32 %v197, 1.442695
    %v199 = vpow.pop %v198
    %v200 = vadd.f32 %v199, 1.0
    %v201 = vrcp.pop %v200
    %v202 = vmul.f32 1.0, %v201
    %v203 = vtanh.pop %v196
    %v204 = vld [vmem:[#allocation3] sm:$0x3]
    %206 = vrot.lane.b32.xlu0 %v204, 32
    %v207 = vpop.permute.xlu0 %206
    %v209 = vmul.f32 %v202, %v207
    %211 = vrot.lane.b32.xlu0 %v203, 32
    %v212 = vpop.permute.xlu0 %211
    %v214 = vmul.f32 %v202, %v212
    %216 = vrot.lane.b32.xlu0 %v214, 32
    %v217 = vpop.permute.xlu0 %216
    %v219 = vadd.f32 %v209, %v217
    %v220 = vtanh.pop %v219
    %222 = vrot.lane.b32.xlu0 %v220, 32
    %v223 = vpop.permute.xlu0 %222
    %v225 = vmul.f32 %v202, %v223
    %227 = vrot.lane.b32.xlu0 %v219, 96
    %v228 = vpop.permute.xlu0 %227
    %vm230 = vcmask 254976
    %231 = vst.msk [vmem:[#allocation3] sm:$0x3] %vm230, %v228
    %233 = vrot.lane.b32.xlu0 %v225, 64
    %v234 = vpop.permute.xlu0 %233
    %236 = vst.msk [vmem:[#allocation2] sm:$0x3] %vm230, %v234
    %v238 = vunpack.c.l.s4 1966171168
    %v239 = vunpack.c.0.s8 %v238
    %v240 = vlaneseq
    %v241 = vshrl.u32 %v240, 7
    %v242 = vsub.s32 %v239, %v241
    %v243 = vrot.slane %v225, %v242
    %v244 = vcombine.high %v243, %v243
    %v246 = vunpack.c.l.s4 1966171168
    %v247 = vunpack.c.0.s8 %v246
    %v248 = vlaneseq
    %v249 = vshrl.u32 %v248, 7
    %v250 = vsub.s32 %v247, %v249
    %v251 = vrot.slane %v243, %v250
    %v253 = vunpack.c.l.s4 1966171168
    %v254 = vunpack.c.0.s8 %v253
    %v255 = vlaneseq
    %v256 = vshrl.u32 %v255, 7
    %v257 = vsub.s32 %v254, %v256
    %v258 = vrot.slane %v244, %v257
    %v259 = vlaneseq
    %v260 = vshrl.u32 %v259, 7
    %v261 = vsub.s32 0, %v260
    %v262 = vrot.slane %v251, %v261
    %v263 = vlaneseq
    %v264 = vshrl.u32 %v263, 7
    %v265 = vsub.s32 0, %v264
    %v266 = vrot.slane %v258, %v265
    %267 = vrot.lane.b32.xlu0 %v262, 64
    %v268 = vpop.permute.xlu0 %267
    %269 = vrot.lane.b32.xlu0 %v266, 64
    %v270 = vpop.permute.xlu0 %269
    %vm273 = vcmask 253952
    %274 = vst.msk [vmem:[#allocation10] sm:$0x1] %vm273, %v268
    %275 = vst.msk [vmem:[#allocation10 + $0x8] sm:$0x1] %vm273, %v270
    %v276 = vld [vmem:[#allocation2] sm:$0x3]
    %v277 = vpack.c.bf16 %v276, %v276
    %v279 = vsel %vm152, %v277, 0
    %281 = vmatprep.subr.bf16.mxu0 0
    %282 = vmatpush1.bf16.msra.mxu0 %v148
    %283 = vmatprep.subr.bf16.mxu0 0
    %284 = vmatpush1.bf16.msra.mxu0 %v149
    %285 = vmatprep.subr.bf16.mxu0 0
    %286 = vmatpush1.bf16.msra.mxu0 0
    %287 = vmatprep.subr.bf16.mxu0 0
    %288 = vmatpush1.bf16.msra.mxu0 0
    %289 = vmatprep.subr.bf16.mxu0 0
    %290 = vmatpush1.bf16.msra.mxu0 0
    %291 = vmatprep.subr.bf16.mxu0 0
    %292 = vmatpush1.bf16.msra.mxu0 0
    %293 = vmatprep.subr.bf16.mxu0 0
    %294 = vmatpush1.bf16.msra.mxu0 0
    %295 = vmatprep.subr.bf16.mxu0 0
    %296 = vmatpush1.bf16.msra.mxu0 0
    %297 = vmatprep.subr.bf16.mxu0 0
    %298 = vmatpush1.bf16.msra.mxu0 0
    %299 = vmatprep.subr.bf16.mxu0 0
    %300 = vmatpush1.bf16.msra.mxu0 0
    %301 = vmatprep.subr.bf16.mxu0 0
    %302 = vmatpush1.bf16.msra.mxu0 0
    %303 = vmatprep.subr.bf16.mxu0 0
    %304 = vmatpush1.bf16.msra.mxu0 0
    %305 = vmatprep.subr.bf16.mxu0 0
    %306 = vmatpush1.bf16.msra.mxu0 0
    %307 = vmatprep.subr.bf16.mxu0 0
    %308 = vmatpush1.bf16.msra.mxu0 0
    %309 = vmatprep.subr.bf16.mxu0 0
    %310 = vmatpush1.bf16.msra.mxu0 0
    %311 = vmatprep.subr.bf16.mxu0 0
    %312 = vmatpush1.bf16.msra.mxu0 0
    %313 = vmatprep.mubr.bf16.mxu0 0
    %314 = vmatmul.mubr.bf16.gmra.mrb[0].mxu0 %v279
    %v315 = vpop.f32.mrb[0].mxu0
    %v316 = vadd.f32 0.0, %v315
    %v317 = vpop.f32.mrb[0].mxu0
    %v318 = vpop.f32.mrb[0].mxu0
    %v319 = vpop.f32.mrb[0].mxu0
    %320 = vdwg.mxu0
    %v322 = vrot.slane %v316, 6
    %v324 = vadd.f32 %v132, %v322
    %v325 = vxor.u32 %v324, 2147483648
    %v326 = vmul.f32 %v325, 1.442695
    %v327 = vpow.pop %v326
    %v328 = vadd.f32 %v327, 1.0
    %v329 = vrcp.pop %v328
    %v330 = vmul.f32 1.0, %v329
    %v331 = vtanh.pop %v324
    %v332 = vld [vmem:[#allocation3] sm:$0x3]
    %v334 = vrot.slane %v332, 6
    %335 = vrot.lane.b32.xlu0 %v334, 32
    %v336 = vpop.permute.xlu0 %335
    %v338 = vmul.f32 %v330, %v336
    %340 = vrot.lane.b32.xlu0 %v331, 32
    %v341 = vpop.permute.xlu0 %340
    %v343 = vmul.f32 %v330, %v341
    %345 = vrot.lane.b32.xlu0 %v343, 32
    %v346 = vpop.permute.xlu0 %345
    %v348 = vadd.f32 %v338, %v346
    %v349 = vtanh.pop %v348
    %351 = vrot.lane.b32.xlu0 %v349, 32
    %v352 = vpop.permute.xlu0 %351
    %v354 = vmul.f32 %v330, %v352
    %356 = vrot.lane.b32.xlu0 %v348, 96
    %v357 = vpop.permute.xlu0 %356
    %vm359 = vcmask 257026
    %360 = vst.msk [vmem:[#allocation3 - $0x2] sm:$0xc] %vm359, %v357
    %362 = vrot.lane.b32.xlu0 %v354, 64
    %v363 = vpop.permute.xlu0 %362
    %365 = vst.msk [vmem:[#allocation2 - $0x2] sm:$0xc] %vm359, %v363
    %v367 = vunpack.c.l.s4 1966171168
    %v368 = vunpack.c.0.s8 %v367
    %v369 = vlaneseq
    %v370 = vshrl.u32 %v369, 7
    %v371 = vsub.s32 %v368, %v370
    %v372 = vrot.slane %v354, %v371
    %v373 = vcombine.high %v372, %v372
    %v375 = vunpack.c.l.s4 1966171168
    %v376 = vunpack.c.0.s8 %v375
    %v377 = vlaneseq
    %v378 = vshrl.u32 %v377, 7
    %v379 = vsub.s32 %v376, %v378
    %v380 = vrot.slane %v372, %v379
    %v382 = vunpack.c.l.s4 1966171168
    %v383 = vunpack.c.0.s8 %v382
    %v384 = vlaneseq
    %v385 = vshrl.u32 %v384, 7
    %v386 = vsub.s32 %v383, %v385
    %v387 = vrot.slane %v373, %v386
    %v388 = vcombine.high %v380, %v380
    %v389 = vcombine.high %v387, %v387
    %v390 = vlaneseq
    %v391 = vshrl.u32 %v390, 7
    %v392 = vsub.s32 0, %v391
    %v393 = vrot.slane %v388, %v392
    %v394 = vlaneseq
    %v395 = vshrl.u32 %v394, 7
    %v396 = vsub.s32 0, %v395
    %v397 = vrot.slane %v389, %v396
    %398 = vrot.lane.b32.xlu0 %v393, 64
    %v399 = vpop.permute.xlu0 %398
    %400 = vrot.lane.b32.xlu0 %v397, 64
    %v401 = vpop.permute.xlu0 %400
    %404 = vst.msk [vmem:[#allocation10 + $0x1] sm:$0x1] %vm273, %v399
    %405 = vst.msk [vmem:[#allocation10 + $0x9] sm:$0x1] %vm273, %v401
    %v406 = vld [vmem:[#allocation2] sm:$0x3]
    %v407 = vpack.c.bf16 %v406, %v406
    %v409 = vsel %vm152, %v407, 0
    %411 = vmatprep.subr.bf16.mxu0 0
    %412 = vmatpush1.bf16.msra.mxu0 %v148
    %413 = vmatprep.subr.bf16.mxu0 0
    %414 = vmatpush1.bf16.msra.mxu0 %v149
    %415 = vmatprep.subr.bf16.mxu0 0
    %416 = vmatpush1.bf16.msra.mxu0 0
    %417 = vmatprep.subr.bf16.mxu0 0
    %418 = vmatpush1.bf16.msra.mxu0 0
    %419 = vmatprep.subr.bf16.mxu0 0
    %420 = vmatpush1.bf16.msra.mxu0 0
    %421 = vmatprep.subr.bf16.mxu0 0
    %422 = vmatpush1.bf16.msra.mxu0 0
    %423 = vmatprep.subr.bf16.mxu0 0
    %424 = vmatpush1.bf16.msra.mxu0 0
    %425 = vmatprep.subr.bf16.mxu0 0
    %426 = vmatpush1.bf16.msra.mxu0 0
    %427 = vmatprep.subr.bf16.mxu0 0
    %428 = vmatpush1.bf16.msra.mxu0 0
    %429 = vmatprep.subr.bf16.mxu0 0
    %430 = vmatpush1.bf16.msra.mxu0 0
    %431 = vmatprep.subr.bf16.mxu0 0
    %432 = vmatpush1.bf16.msra.mxu0 0
    %433 = vmatprep.subr.bf16.mxu0 0
    %434 = vmatpush1.bf16.msra.mxu0 0
    %435 = vmatprep.subr.bf16.mxu0 0
    %436 = vmatpush1.bf16.msra.mxu0 0
    %437 = vmatprep.subr.bf16.mxu0 0
    %438 = vmatpush1.bf16.msra.mxu0 0
    %439 = vmatprep.subr.bf16.mxu0 0
    %440 = vmatpush1.bf16.msra.mxu0 0
    %441 = vmatprep.subr.bf16.mxu0 0
    %442 = vmatpush1.bf16.msra.mxu0 0
    %443 = vmatprep.mubr.bf16.mxu0 0
    %444 = vmatmul.mubr.bf16.gmra.mrb[0].mxu0 %v409
    %v445 = vpop.f32.mrb[0].mxu0
    %v446 = vadd.f32 0.0, %v445
    %v447 = vpop.f32.mrb[0].mxu0
    %v448 = vpop.f32.mrb[0].mxu0
    %v449 = vpop.f32.mrb[0].mxu0
    %450 = vdwg.mxu0
    %v452 = vrot.slane %v446, 4
    %v454 = vadd.f32 %v132, %v452
    %v455 = vxor.u32 %v454, 2147483648
    %v456 = vmul.f32 %v455, 1.442695
    %v457 = vpow.pop %v456
    %v458 = vadd.f32 %v457, 1.0
    %v459 = vrcp.pop %v458
    %v460 = vmul.f32 1.0, %v459
    %v461 = vtanh.pop %v454
    %v462 = vld [vmem:[#allocation3] sm:$0x3]
    %v464 = vrot.slane %v462, 4
    %465 = vrot.lane.b32.xlu0 %v464, 32
    %v466 = vpop.permute.xlu0 %465
    %v468 = vmul.f32 %v460, %v466
    %470 = vrot.lane.b32.xlu0 %v461, 32
    %v471 = vpop.permute.xlu0 %470
    %v473 = vmul.f32 %v460, %v471
    %475 = vrot.lane.b32.xlu0 %v473, 32
    %v476 = vpop.permute.xlu0 %475
    %v478 = vadd.f32 %v468, %v476
    %v479 = vtanh.pop %v478
    %481 = vrot.lane.b32.xlu0 %v479, 32
    %v482 = vpop.permute.xlu0 %481
    %v484 = vmul.f32 %v460, %v482
    %486 = vrot.lane.b32.xlu0 %v478, 96
    %v487 = vpop.permute.xlu0 %486
    %vm489 = vcmask 259076
    %490 = vst.msk [vmem:[#allocation3 - $0x4] sm:$0x30] %vm489, %v487
    %492 = vrot.lane.b32.xlu0 %v484, 64
    %v493 = vpop.permute.xlu0 %492
    %495 = vst.msk [vmem:[#allocation2 - $0x4] sm:$0x30] %vm489, %v493
    %v496 = vcombine.high %v484, %v484
    %v498 = vunpack.c.l.s4 1966171168
    %v499 = vunpack.c.0.s8 %v498
    %v500 = vlaneseq
    %v501 = vshrl.u32 %v500, 7
    %v502 = vsub.s32 %v499, %v501
    %v503 = vrot.slane %v496, %v502
    %v504 = vcombine.high %v503, %v503
    %v506 = vunpack.c.l.s4 1966171168
    %v507 = vunpack.c.0.s8 %v506
    %v508 = vlaneseq
    %v509 = vshrl.u32 %v508, 7
    %v510 = vsub.s32 %v507, %v509
    %v511 = vrot.slane %v503, %v510
    %v513 = vunpack.c.l.s4 1966171168
    %v514 = vunpack.c.0.s8 %v513
    %v515 = vlaneseq
    %v516 = vshrl.u32 %v515, 7
    %v517 = vsub.s32 %v514, %v516
    %v518 = vrot.slane %v504, %v517
    %v519 = vlaneseq
    %v520 = vshrl.u32 %v519, 7
    %v521 = vsub.s32 0, %v520
    %v522 = vrot.slane %v511, %v521
    %v523 = vlaneseq
    %v524 = vshrl.u32 %v523, 7
    %v525 = vsub.s32 0, %v524
    %v526 = vrot.slane %v518, %v525
    %527 = vrot.lane.b32.xlu0 %v522, 64
    %v528 = vpop.permute.xlu0 %527
    %529 = vrot.lane.b32.xlu0 %v526, 64
    %v530 = vpop.permute.xlu0 %529
    %533 = vst.msk [vmem:[#allocation10 + $0x2] sm:$0x1] %vm273, %v528
    %534 = vst.msk [vmem:[#allocation10 + $0xa] sm:$0x1] %vm273, %v530
    %v535 = vld [vmem:[#allocation2] sm:$0x3]
    %v536 = vpack.c.bf16 %v535, %v535
    %v538 = vsel %vm152, %v536, 0
    %540 = vmatprep.subr.bf16.mxu0 0
    %541 = vmatpush1.bf16.msra.mxu0 %v148
    %542 = vmatprep.subr.bf16.mxu0 0
    %543 = vmatpush1.bf16.msra.mxu0 %v149
    %544 = vmatprep.subr.bf16.mxu0 0
    %545 = vmatpush1.bf16.msra.mxu0 0
    %546 = vmatprep.subr.bf16.mxu0 0
    %547 = vmatpush1.bf16.msra.mxu0 0
    %548 = vmatprep.subr.bf16.mxu0 0
    %549 = vmatpush1.bf16.msra.mxu0 0
    %550 = vmatprep.subr.bf16.mxu0 0
    %551 = vmatpush1.bf16.msra.mxu0 0
    %552 = vmatprep.subr.bf16.mxu0 0
    %553 = vmatpush1.bf16.msra.mxu0 0
    %554 = vmatprep.subr.bf16.mxu0 0
    %555 = vmatpush1.bf16.msra.mxu0 0
    %556 = vmatprep.subr.bf16.mxu0 0
    %557 = vmatpush1.bf16.msra.mxu0 0
    %558 = vmatprep.subr.bf16.mxu0 0
    %559 = vmatpush1.bf16.msra.mxu0 0
    %560 = vmatprep.subr.bf16.mxu0 0
    %561 = vmatpush1.bf16.msra.mxu0 0
    %562 = vmatprep.subr.bf16.mxu0 0
    %563 = vmatpush1.bf16.msra.mxu0 0
    %564 = vmatprep.subr.bf16.mxu0 0
    %565 = vmatpush1.bf16.msra.mxu0 0
    %566 = vmatprep.subr.bf16.mxu0 0
    %567 = vmatpush1.bf16.msra.mxu0 0
    %568 = vmatprep.subr.bf16.mxu0 0
    %569 = vmatpush1.bf16.msra.mxu0 0
    %570 = vmatprep.subr.bf16.mxu0 0
    %571 = vmatpush1.bf16.msra.mxu0 0
    %572 = vmatprep.mubr.bf16.mxu0 0
    %573 = vmatmul.mubr.bf16.gmra.mrb[0].mxu0 %v538
    %v574 = vpop.f32.mrb[0].mxu0
    %v575 = vadd.f32 0.0, %v574
    %v576 = vpop.f32.mrb[0].mxu0
    %v577 = vpop.f32.mrb[0].mxu0
    %v578 = vpop.f32.mrb[0].mxu0
    %579 = vdwg.mxu0
    %v581 = vrot.slane %v575, 2
    %v583 = vadd.f32 %v132, %v581
    %v584 = vxor.u32 %v583, 2147483648
    %v585 = vmul.f32 %v584, 1.442695
    %v586 = vpow.pop %v585
    %v587 = vadd.f32 %v586, 1.0
    %v588 = vrcp.pop %v587
    %v589 = vmul.f32 1.0, %v588
    %v590 = vtanh.pop %v583
    %v591 = vld [vmem:[#allocation3] sm:$0x3]
    %v593 = vrot.slane %v591, 2
    %594 = vrot.lane.b32.xlu0 %v593, 32
    %v595 = vpop.permute.xlu0 %594
    %v597 = vmul.f32 %v589, %v595
    %599 = vrot.lane.b32.xlu0 %v590, 32
    %v600 = vpop.permute.xlu0 %599
    %v602 = vmul.f32 %v589, %v600
    %604 = vrot.lane.b32.xlu0 %v602, 32
    %v605 = vpop.permute.xlu0 %604
    %v607 = vadd.f32 %v597, %v605
    %v608 = vtanh.pop %v607
    %610 = vrot.lane.b32.xlu0 %v608, 32
    %v611 = vpop.permute.xlu0 %610
    %v613 = vmul.f32 %v589, %v611
    %615 = vrot.lane.b32.xlu0 %v607, 96
    %v616 = vpop.permute.xlu0 %615
    %vm618 = vcmask 261126
    %619 = vst.msk [vmem:[#allocation3 - $0x6] sm:$0xc0] %vm618, %v616
    %621 = vrot.lane.b32.xlu0 %v613, 64
    %v622 = vpop.permute.xlu0 %621
    %624 = vst.msk [vmem:[#allocation2 - $0x6] sm:$0xc0] %vm618, %v622
    %v625 = vcombine.high %v613, %v613
    %v627 = vunpack.c.l.s4 1966171168
    %v628 = vunpack.c.0.s8 %v627
    %v629 = vlaneseq
    %v630 = vshrl.u32 %v629, 7
    %v631 = vsub.s32 %v628, %v630
    %v632 = vrot.slane %v625, %v631
    %v633 = vcombine.high %v632, %v632
    %v635 = vunpack.c.l.s4 1966171168
    %v636 = vunpack.c.0.s8 %v635
    %v637 = vlaneseq
    %v638 = vshrl.u32 %v637, 7
    %v639 = vsub.s32 %v636, %v638
    %v640 = vrot.slane %v632, %v639
    %v642 = vunpack.c.l.s4 1966171168
    %v643 = vunpack.c.0.s8 %v642
    %v644 = vlaneseq
    %v645 = vshrl.u32 %v644, 7
    %v646 = vsub.s32 %v643, %v645
    %v647 = vrot.slane %v633, %v646
    %v648 = vcombine.high %v640, %v640
    %v649 = vcombine.high %v647, %v647
    %v650 = vlaneseq
    %v651 = vshrl.u32 %v650, 7
    %v652 = vsub.s32 0, %v651
    %v653 = vrot.slane %v648, %v652
    %v654 = vlaneseq
    %v655 = vshrl.u32 %v654, 7
    %v656 = vsub.s32 0, %v655
    %v657 = vrot.slane %v649, %v656
    %658 = vrot.lane.b32.xlu0 %v653, 64
    %v659 = vpop.permute.xlu0 %658
    %660 = vrot.lane.b32.xlu0 %v657, 64
    %v661 = vpop.permute.xlu0 %660
    %664 = vst.msk [vmem:[#allocation10 + $0x3] sm:$0x1] %vm273, %v659
    %665 = vst.msk [vmem:[#allocation10 + $0xb] sm:$0x1] %vm273, %v661
    %v666 = vld [vmem:[#allocation2] sm:$0x3]
    %v667 = vpack.c.bf16 %v666, %v666
    %v669 = vsel %vm152, %v667, 0
    %671 = vmatprep.subr.bf16.mxu0 0
    %672 = vmatpush1.bf16.msra.mxu0 %v148
    %673 = vmatprep.subr.bf16.mxu0 0
    %674 = vmatpush1.bf16.msra.mxu0 %v149
    %675 = vmatprep.subr.bf16.mxu0 0
    %676 = vmatpush1.bf16.msra.mxu0 0
    %677 = vmatprep.subr.bf16.mxu0 0
    %678 = vmatpush1.bf16.msra.mxu0 0
    %679 = vmatprep.subr.bf16.mxu0 0
    %680 = vmatpush1.bf16.msra.mxu0 0
    %681 = vmatprep.subr.bf16.mxu0 0
    %682 = vmatpush1.bf16.msra.mxu0 0
    %683 = vmatprep.subr.bf16.mxu0 0
    %684 = vmatpush1.bf16.msra.mxu0 0
    %685 = vmatprep.subr.bf16.mxu0 0
    %686 = vmatpush1.bf16.msra.mxu0 0
    %687 = vmatprep.subr.bf16.mxu0 0
    %688 = vmatpush1.bf16.msra.mxu0 0
    %689 = vmatprep.subr.bf16.mxu0 0
    %690 = vmatpush1.bf16.msra.mxu0 0
    %691 = vmatprep.subr.bf16.mxu0 0
    %692 = vmatpush1.bf16.msra.mxu0 0
    %693 = vmatprep.subr.bf16.mxu0 0
    %694 = vmatpush1.bf16.msra.mxu0 0
    %695 = vmatprep.subr.bf16.mxu0 0
    %696 = vmatpush1.bf16.msra.mxu0 0
    %697 = vmatprep.subr.bf16.mxu0 0
    %698 = vmatpush1.bf16.msra.mxu0 0
    %699 = vmatprep.subr.bf16.mxu0 0
    %700 = vmatpush1.bf16.msra.mxu0 0
    %701 = vmatprep.subr.bf16.mxu0 0
    %702 = vmatpush1.bf16.msra.mxu0 0
    %703 = vmatprep.mubr.bf16.mxu0 0
    %704 = vmatmul.mubr.bf16.gmra.mrb[0].mxu0 %v669
    %v705 = vpop.f32.mrb[0].mxu0
    %v706 = vadd.f32 0.0, %v705
    %v707 = vpop.f32.mrb[0].mxu0
    %v708 = vpop.f32.mrb[0].mxu0
    %v709 = vpop.f32.mrb[0].mxu0
    %710 = vdwg.mxu0
    %v711 = vadd.f32 %v135, %v706
    %v712 = vxor.u32 %v711, 2147483648
    %v713 = vmul.f32 %v712, 1.442695
    %v714 = vpow.pop %v713
    %v715 = vadd.f32 %v714, 1.0
    %v716 = vrcp.pop %v715
    %v717 = vmul.f32 1.0, %v716
    %v718 = vtanh.pop %v711
    %v719 = vld [vmem:[#allocation3] sm:$0x3]
    %721 = vrot.lane.b32.xlu0 %v719, 32
    %v722 = vpop.permute.xlu0 %721
    %v724 = vmul.f32 %v717, %v722
    %726 = vrot.lane.b32.xlu0 %v718, 32
    %v727 = vpop.permute.xlu0 %726
    %v729 = vmul.f32 %v717, %v727
    %731 = vrot.lane.b32.xlu0 %v729, 32
    %v732 = vpop.permute.xlu0 %731
    %v734 = vadd.f32 %v724, %v732
    %v735 = vtanh.pop %v734
    %737 = vrot.lane.b32.xlu0 %v735, 32
    %v738 = vpop.permute.xlu0 %737
    %v740 = vmul.f32 %v717, %v738
    %742 = vrot.lane.b32.xlu0 %v734, 96
    %v743 = vpop.permute.xlu0 %742
    %745 = vst.msk [vmem:[#allocation3] sm:$0x3] %vm230, %v743
    %747 = vrot.lane.b32.xlu0 %v740, 64
    %v748 = vpop.permute.xlu0 %747
    %750 = vst.msk [vmem:[#allocation2] sm:$0x3] %vm230, %v748
    %v752 = vunpack.c.l.s4 1966171168
    %v753 = vunpack.c.0.s8 %v752
    %v754 = vlaneseq
    %v755 = vshrl.u32 %v754, 7
    %v756 = vsub.s32 %v753, %v755
    %v757 = vrot.slane %v740, %v756
    %v758 = vcombine.high %v757, %v757
    %v760 = vunpack.c.l.s4 1966171168
    %v761 = vunpack.c.0.s8 %v760
    %v762 = vlaneseq
    %v763 = vshrl.u32 %v762, 7
    %v764 = vsub.s32 %v761, %v763
    %v765 = vrot.slane %v757, %v764
    %v767 = vunpack.c.l.s4 1966171168
    %v768 = vunpack.c.0.s8 %v767
    %v769 = vlaneseq
    %v770 = vshrl.u32 %v769, 7
    %v771 = vsub.s32 %v768, %v770
    %v772 = vrot.slane %v758, %v771
    %v773 = vlaneseq
    %v774 = vshrl.u32 %v773, 7
    %v775 = vsub.s32 0, %v774
    %v776 = vrot.slane %v765, %v775
    %v777 = vlaneseq
    %v778 = vshrl.u32 %v777, 7
    %v779 = vsub.s32 0, %v778
    %v780 = vrot.slane %v772, %v779
    %781 = vrot.lane.b32.xlu0 %v776, 64
    %v782 = vpop.permute.xlu0 %781
    %783 = vrot.lane.b32.xlu0 %v780, 64
    %v784 = vpop.permute.xlu0 %783
    %787 = vst.msk [vmem:[#allocation10 + $0x4] sm:$0x1] %vm273, %v782
    %788 = vst.msk [vmem:[#allocation10 + $0xc] sm:$0x1] %vm273, %v784
    %v789 = vld [vmem:[#allocation2] sm:$0x3]
    %v790 = vpack.c.bf16 %v789, %v789
    %v792 = vsel %vm152, %v790, 0
    %794 = vmatprep.subr.bf16.mxu0 0
    %795 = vmatpush1.bf16.msra.mxu0 %v148
    %796 = vmatprep.subr.bf16.mxu0 0
    %797 = vmatpush1.bf16.msra.mxu0 %v149
    %798 = vmatprep.subr.bf16.mxu0 0
    %799 = vmatpush1.bf16.msra.mxu0 0
    %800 = vmatprep.subr.bf16.mxu0 0
    %801 = vmatpush1.bf16.msra.mxu0 0
    %802 = vmatprep.subr.bf16.mxu0 0
    %803 = vmatpush1.bf16.msra.mxu0 0
    %804 = vmatprep.subr.bf16.mxu0 0
    %805 = vmatpush1.bf16.msra.mxu0 0
    %806 = vmatprep.subr.bf16.mxu0 0
    %807 = vmatpush1.bf16.msra.mxu0 0
    %808 = vmatprep.subr.bf16.mxu0 0
    %809 = vmatpush1.bf16.msra.mxu0 0
    %810 = vmatprep.subr.bf16.mxu0 0
    %811 = vmatpush1.bf16.msra.mxu0 0
    %812 = vmatprep.subr.bf16.mxu0 0
    %813 = vmatpush1.bf16.msra.mxu0 0
    %814 = vmatprep.subr.bf16.mxu0 0
    %815 = vmatpush1.bf16.msra.mxu0 0
    %816 = vmatprep.subr.bf16.mxu0 0
    %817 = vmatpush1.bf16.msra.mxu0 0
    %818 = vmatprep.subr.bf16.mxu0 0
    %819 = vmatpush1.bf16.msra.mxu0 0
    %820 = vmatprep.subr.bf16.mxu0 0
    %821 = vmatpush1.bf16.msra.mxu0 0
    %822 = vmatprep.subr.bf16.mxu0 0
    %823 = vmatpush1.bf16.msra.mxu0 0
    %824 = vmatprep.subr.bf16.mxu0 0
    %825 = vmatpush1.bf16.msra.mxu0 0
    %826 = vmatprep.mubr.bf16.mxu0 0
    %827 = vmatmul.mubr.bf16.gmra.mrb[0].mxu0 %v792
    %v828 = vpop.f32.mrb[0].mxu0
    %v829 = vadd.f32 0.0, %v828
    %v830 = vpop.f32.mrb[0].mxu0
    %v831 = vpop.f32.mrb[0].mxu0
    %v832 = vpop.f32.mrb[0].mxu0
    %833 = vdwg.mxu0
    %v835 = vrot.slane %v829, 6
    %v837 = vadd.f32 %v135, %v835
    %v838 = vxor.u32 %v837, 2147483648
    %v839 = vmul.f32 %v838, 1.442695
    %v840 = vpow.pop %v839
    %v841 = vadd.f32 %v840, 1.0
    %v842 = vrcp.pop %v841
    %v843 = vmul.f32 1.0, %v842
    %v844 = vtanh.pop %v837
    %v845 = vld [vmem:[#allocation3] sm:$0x3]
    %v847 = vrot.slane %v845, 6
    %848 = vrot.lane.b32.xlu0 %v847, 32
    %v849 = vpop.permute.xlu0 %848
    %v851 = vmul.f32 %v843, %v849
    %853 = vrot.lane.b32.xlu0 %v844, 32
    %v854 = vpop.permute.xlu0 %853
    %v856 = vmul.f32 %v843, %v854
    %858 = vrot.lane.b32.xlu0 %v856, 32
    %v859 = vpop.permute.xlu0 %858
    %v861 = vadd.f32 %v851, %v859
    %v862 = vtanh.pop %v861
    %864 = vrot.lane.b32.xlu0 %v862, 32
    %v865 = vpop.permute.xlu0 %864
    %v867 = vmul.f32 %v843, %v865
    %869 = vrot.lane.b32.xlu0 %v861, 96
    %v870 = vpop.permute.xlu0 %869
    %872 = vst.msk [vmem:[#allocation3 - $0x2] sm:$0xc] %vm359, %v870
    %874 = vrot.lane.b32.xlu0 %v867, 64
    %v875 = vpop.permute.xlu0 %874
    %877 = vst.msk [vmem:[#allocation2 - $0x2] sm:$0xc] %vm359, %v875
    %v879 = vunpack.c.l.s4 1966171168
    %v880 = vunpack.c.0.s8 %v879
    %v881 = vlaneseq
    %v882 = vshrl.u32 %v881, 7
    %v883 = vsub.s32 %v880, %v882
    %v884 = vrot.slane %v867, %v883
    %v885 = vcombine.high %v884, %v884
    %v887 = vunpack.c.l.s4 1966171168
    %v888 = vunpack.c.0.s8 %v887
    %v889 = vlaneseq
    %v890 = vshrl.u32 %v889, 7
    %v891 = vsub.s32 %v888, %v890
    %v892 = vrot.slane %v884, %v891
    %v894 = vunpack.c.l.s4 1966171168
    %v895 = vunpack.c.0.s8 %v894
    %v896 = vlaneseq
    %v897 = vshrl.u32 %v896, 7
    %v898 = vsub.s32 %v895, %v897
    %v899 = vrot.slane %v885, %v898
    %v900 = vcombine.high %v892, %v892
    %v901 = vcombine.high %v899, %v899
    %v902 = vlaneseq
    %v903 = vshrl.u32 %v902, 7
    %v904 = vsub.s32 0, %v903
    %v905 = vrot.slane %v900, %v904
    %v906 = vlaneseq
    %v907 = vshrl.u32 %v906, 7
    %v908 = vsub.s32 0, %v907
    %v909 = vrot.slane %v901, %v908
    %910 = vrot.lane.b32.xlu0 %v905, 64
    %v911 = vpop.permute.xlu0 %910
    %912 = vrot.lane.b32.xlu0 %v909, 64
    %v913 = vpop.permute.xlu0 %912
    %916 = vst.msk [vmem:[#allocation10 + $0x5] sm:$0x1] %vm273, %v911
    %917 = vst.msk [vmem:[#allocation10 + $0xd] sm:$0x1] %vm273, %v913
    %v918 = vld [vmem:[#allocation2] sm:$0x3]
    %v919 = vpack.c.bf16 %v918, %v918
    %v921 = vsel %vm152, %v919, 0
    %923 = vmatprep.subr.bf16.mxu0 0
    %924 = vmatpush1.bf16.msra.mxu0 %v148
    %925 = vmatprep.subr.bf16.mxu0 0
    %926 = vmatpush1.bf16.msra.mxu0 %v149
    %927 = vmatprep.subr.bf16.mxu0 0
    %928 = vmatpush1.bf16.msra.mxu0 0
    %929 = vmatprep.subr.bf16.mxu0 0
    %930 = vmatpush1.bf16.msra.mxu0 0
    %931 = vmatprep.subr.bf16.mxu0 0
    %932 = vmatpush1.bf16.msra.mxu0 0
    %933 = vmatprep.subr.bf16.mxu0 0
    %934 = vmatpush1.bf16.msra.mxu0 0
    %935 = vmatprep.subr.bf16.mxu0 0
    %936 = vmatpush1.bf16.msra.mxu0 0
    %937 = vmatprep.subr.bf16.mxu0 0
    %938 = vmatpush1.bf16.msra.mxu0 0
    %939 = vmatprep.subr.bf16.mxu0 0
    %940 = vmatpush1.bf16.msra.mxu0 0
    %941 = vmatprep.subr.bf16.mxu0 0
    %942 = vmatpush1.bf16.msra.mxu0 0
    %943 = vmatprep.subr.bf16.mxu0 0
    %944 = vmatpush1.bf16.msra.mxu0 0
    %945 = vmatprep.subr.bf16.mxu0 0
    %946 = vmatpush1.bf16.msra.mxu0 0
    %947 = vmatprep.subr.bf16.mxu0 0
    %948 = vmatpush1.bf16.msra.mxu0 0
    %949 = vmatprep.subr.bf16.mxu0 0
    %950 = vmatpush1.bf16.msra.mxu0 0
    %951 = vmatprep.subr.bf16.mxu0 0
    %952 = vmatpush1.bf16.msra.mxu0 0
    %953 = vmatprep.subr.bf16.mxu0 0
    %954 = vmatpush1.bf16.msra.mxu0 0
    %955 = vmatprep.mubr.bf16.mxu0 0
    %956 = vmatmul.mubr.bf16.gmra.mrb[0].mxu0 %v921
    %v957 = vpop.f32.mrb[0].mxu0
    %v958 = vadd.f32 0.0, %v957
    %v959 = vpop.f32.mrb[0].mxu0
    %v960 = vpop.f32.mrb[0].mxu0
    %v961 = vpop.f32.mrb[0].mxu0
    %962 = vdwg.mxu0
    %v964 = vrot.slane %v958, 4
    %v966 = vadd.f32 %v135, %v964
    %v967 = vxor.u32 %v966, 2147483648
    %v968 = vmul.f32 %v967, 1.442695
    %v969 = vpow.pop %v968
    %v970 = vadd.f32 %v969, 1.0
    %v971 = vrcp.pop %v970
    %v972 = vmul.f32 1.0, %v971
    %v973 = vtanh.pop %v966
    %v974 = vld [vmem:[#allocation3] sm:$0x3]
    %v976 = vrot.slane %v974, 4
    %977 = vrot.lane.b32.xlu0 %v976, 32
    %v978 = vpop.permute.xlu0 %977
    %v980 = vmul.f32 %v972, %v978
    %982 = vrot.lane.b32.xlu0 %v973, 32
    %v983 = vpop.permute.xlu0 %982
    %v985 = vmul.f32 %v972, %v983
    %987 = vrot.lane.b32.xlu0 %v985, 32
    %v988 = vpop.permute.xlu0 %987
    %v990 = vadd.f32 %v980, %v988
    %v991 = vtanh.pop %v990
    %993 = vrot.lane.b32.xlu0 %v991, 32
    %v994 = vpop.permute.xlu0 %993
    %v996 = vmul.f32 %v972, %v994
    %998 = vrot.lane.b32.xlu0 %v990, 96
    %v999 = vpop.permute.xlu0 %998
    %1001 = vst.msk [vmem:[#allocation3 - $0x4] sm:$0x30] %vm489, %v999
    %1003 = vrot.lane.b32.xlu0 %v996, 64
    %v1004 = vpop.permute.xlu0 %1003
    %1006 = vst.msk [vmem:[#allocation2 - $0x4] sm:$0x30] %vm489, %v1004
    %v1007 = vcombine.high %v996, %v996
    %v1009 = vunpack.c.l.s4 1966171168
    %v1010 = vunpack.c.0.s8 %v1009
    %v1011 = vlaneseq
    %v1012 = vshrl.u32 %v1011, 7
    %v1013 = vsub.s32 %v1010, %v1012
    %v1014 = vrot.slane %v1007, %v1013
    %v1015 = vcombine.high %v1014, %v1014
    %v1017 = vunpack.c.l.s4 1966171168
    %v1018 = vunpack.c.0.s8 %v1017
    %v1019 = vlaneseq
    %v1020 = vshrl.u32 %v1019, 7
    %v1021 = vsub.s32 %v1018, %v1020
    %v1022 = vrot.slane %v1014, %v1021
    %v1024 = vunpack.c.l.s4 1966171168
    %v1025 = vunpack.c.0.s8 %v1024
    %v1026 = vlaneseq
    %v1027 = vshrl.u32 %v1026, 7
    %v1028 = vsub.s32 %v1025, %v1027
    %v1029 = vrot.slane %v1015, %v1028
    %v1030 = vlaneseq
    %v1031 = vshrl.u32 %v1030, 7
    %v1032 = vsub.s32 0, %v1031
    %v1033 = vrot.slane %v1022, %v1032
    %v1034 = vlaneseq
    %v1035 = vshrl.u32 %v1034, 7
    %v1036 = vsub.s32 0, %v1035
    %v1037 = vrot.slane %v1029, %v1036
    %1038 = vrot.lane.b32.xlu0 %v1033, 64
    %v1039 = vpop.permute.xlu0 %1038
    %1040 = vrot.lane.b32.xlu0 %v1037, 64
    %v1041 = vpop.permute.xlu0 %1040
    %1044 = vst.msk [vmem:[#allocation10 + $0x6] sm:$0x1] %vm273, %v1039
    %1045 = vst.msk [vmem:[#allocation10 + $0xe] sm:$0x1] %vm273, %v1041
    %v1046 = vld [vmem:[#allocation2] sm:$0x3]
    %v1047 = vpack.c.bf16 %v1046, %v1046
    %v1049 = vsel %vm152, %v1047, 0
    %1051 = vmatprep.subr.bf16.mxu0 0
    %1052 = vmatpush1.bf16.msra.mxu0 %v148
    %1053 = vmatprep.subr.bf16.mxu0 0
    %1054 = vmatpush1.bf16.msra.mxu0 %v149
    %1055 = vmatprep.subr.bf16.mxu0 0
    %1056 = vmatpush1.bf16.msra.mxu0 0
    %1057 = vmatprep.subr.bf16.mxu0 0
    %1058 = vmatpush1.bf16.msra.mxu0 0
    %1059 = vmatprep.subr.bf16.mxu0 0
    %1060 = vmatpush1.bf16.msra.mxu0 0
    %1061 = vmatprep.subr.bf16.mxu0 0
    %1062 = vmatpush1.bf16.msra.mxu0 0
    %1063 = vmatprep.subr.bf16.mxu0 0
    %1064 = vmatpush1.bf16.msra.mxu0 0
    %1065 = vmatprep.subr.bf16.mxu0 0
    %1066 = vmatpush1.bf16.msra.mxu0 0
    %1067 = vmatprep.subr.bf16.mxu0 0
    %1068 = vmatpush1.bf16.msra.mxu0 0
    %1069 = vmatprep.subr.bf16.mxu0 0
    %1070 = vmatpush1.bf16.msra.mxu0 0
    %1071 = vmatprep.subr.bf16.mxu0 0
    %1072 = vmatpush1.bf16.msra.mxu0 0
    %1073 = vmatprep.subr.bf16.mxu0 0
    %1074 = vmatpush1.bf16.msra.mxu0 0
    %1075 = vmatprep.subr.bf16.mxu0 0
    %1076 = vmatpush1.bf16.msra.mxu0 0
    %1077 = vmatprep.subr.bf16.mxu0 0
    %1078 = vmatpush1.bf16.msra.mxu0 0
    %1079 = vmatprep.subr.bf16.mxu0 0
    %1080 = vmatpush1.bf16.msra.mxu0 0
    %1081 = vmatprep.subr.bf16.mxu0 0
    %1082 = vmatpush1.bf16.msra.mxu0 0
    %1083 = vmatprep.mubr.bf16.mxu0 0
    %1084 = vmatmul.mubr.bf16.gmra.mrb[0].mxu0 %v1049
    %v1085 = vpop.f32.mrb[0].mxu0
    %v1086 = vadd.f32 0.0, %v1085
    %v1087 = vpop.f32.mrb[0].mxu0
    %v1088 = vpop.f32.mrb[0].mxu0
    %v1089 = vpop.f32.mrb[0].mxu0
    %1090 = vdwg.mxu0
    %v1092 = vrot.slane %v1086, 2
    %v1094 = vadd.f32 %v135, %v1092
    %v1095 = vxor.u32 %v1094, 2147483648
    %v1096 = vmul.f32 %v1095, 1.442695
    %v1097 = vpow.pop %v1096
    %v1098 = vadd.f32 %v1097, 1.0
    %v1099 = vrcp.pop %v1098
    %v1100 = vmul.f32 1.0, %v1099
    %v1101 = vtanh.pop %v1094
    %v1102 = vld [vmem:[#allocation3] sm:$0x3]
    %v1104 = vrot.slane %v1102, 2
    %1105 = vrot.lane.b32.xlu0 %v1104, 32
    %v1106 = vpop.permute.xlu0 %1105
    %v1108 = vmul.f32 %v1100, %v1106
    %1110 = vrot.lane.b32.xlu0 %v1101, 32
    %v1111 = vpop.permute.xlu0 %1110
    %v1113 = vmul.f32 %v1100, %v1111
    %1115 = vrot.lane.b32.xlu0 %v1113, 32
    %v1116 = vpop.permute.xlu0 %1115
    %v1118 = vadd.f32 %v1108, %v1116
    %v1119 = vtanh.pop %v1118
    %1121 = vrot.lane.b32.xlu0 %v1119, 32
    %v1122 = vpop.permute.xlu0 %1121
    %v1124 = vmul.f32 %v1100, %v1122
    %1126 = vrot.lane.b32.xlu0 %v1118, 96
    %v1127 = vpop.permute.xlu0 %1126
    %1129 = vst.msk [vmem:[#allocation3 - $0x6] sm:$0xc0] %vm618, %v1127
    %1131 = vrot.lane.b32.xlu0 %v1124, 64
    %v1132 = vpop.permute.xlu0 %1131
    %1134 = vst.msk [vmem:[#allocation2 - $0x6] sm:$0xc0] %vm618, %v1132
    %v1135 = vcombine.high %v1124, %v1124
    %v1137 = vunpack.c.l.s4 1966171168
    %v1138 = vunpack.c.0.s8 %v1137
    %v1139 = vlaneseq
    %v1140 = vshrl.u32 %v1139, 7
    %v1141 = vsub.s32 %v1138, %v1140
    %v1142 = vrot.slane %v1135, %v1141
    %v1143 = vcombine.high %v1142, %v1142
    %v1145 = vunpack.c.l.s4 1966171168
    %v1146 = vunpack.c.0.s8 %v1145
    %v1147 = vlaneseq
    %v1148 = vshrl.u32 %v1147, 7
    %v1149 = vsub.s32 %v1146, %v1148
    %v1150 = vrot.slane %v1142, %v1149
    %v1152 = vunpack.c.l.s4 1966171168
    %v1153 = vunpack.c.0.s8 %v1152
    %v1154 = vlaneseq
    %v1155 = vshrl.u32 %v1154, 7
    %v1156 = vsub.s32 %v1153, %v1155
    %v1157 = vrot.slane %v1143, %v1156
    %v1158 = vcombine.high %v1150, %v1150
    %v1159 = vcombine.high %v1157, %v1157
    %v1160 = vlaneseq
    %v1161 = vshrl.u32 %v1160, 7
    %v1162 = vsub.s32 0, %v1161
    %v1163 = vrot.slane %v1158, %v1162
    %v1164 = vlaneseq
    %v1165 = vshrl.u32 %v1164, 7
    %v1166 = vsub.s32 0, %v1165
    %v1167 = vrot.slane %v1159, %v1166
    %1168 = vrot.lane.b32.xlu0 %v1163, 64
    %v1169 = vpop.permute.xlu0 %1168
    %1170 = vrot.lane.b32.xlu0 %v1167, 64
    %v1171 = vpop.permute.xlu0 %1170
    %1174 = vst.msk [vmem:[#allocation10 + $0x7] sm:$0x1] %vm273, %v1169
    %1175 = vst.msk [vmem:[#allocation10 + $0xf] sm:$0x1] %vm273, %v1171
    // Predicated region
    $region34: #{tpu_custom_call.1} parent=1 // pred_check
      _
    $region35: #{tpu_custom_call.1} parent=1 // pred_check_branch
      %1177 = sbr.rel (0) target = $region37
    $region36: #{tpu_custom_call.1} parent=1 // pred_region
      %s1179 = ssub.s32 256, 256
      %1180 = vsyncadd [#allocation6], %s1179
      %s1181 = sshll.u32 [#allocation10], 4
      %s1182 = int_to_ptr.vmem [resolvable:$true] %s1181
      %1187 = dma.vmem_to_hbm [thread:$0]  %s1182, 256, %s4, [#allocation6], 128, 128, 8
    $region37: #{tpu_custom_call.1} parent=1 // pred_fallthru
      _
    // Predicated region
    $region38: #{tpu_custom_call.1} parent=1 // pred_check
      _
    $region39: #{tpu_custom_call.1} parent=1 // pred_check_branch
      %1189 = sbr.rel (0) target = $region41
    $region40: #{tpu_custom_call.1} parent=1 // pred_region
      %1190 = dma.done [#allocation6], 256
    $region41: #{tpu_custom_call.1} parent=1 // pred_fallthru
      _
    %1191 = vsyncpa [#allocation5], 1
    %1192 = vsyncpa [#allocation8], 1
    %1193 = vsyncpa [#allocation6], 1

</llo_original>
